<compile_context>
chip_gen: v7x
topology: tpu7x:2x2x1
jax: 0.10.0
libtpu: 0.0.40
codegen_flags: <defaults>
</compile_context>

<pallas_src>
import jax
import jax.numpy as jnp
from jax.experimental import pallas as pl
from jax.experimental.pallas import tpu as pltpu

NEG_SLOPE = 0.2  # torch_geometric HypergraphConv default negative_slope


def _bf16(x):
    return x.astype(jnp.bfloat16)


def bdot(a, b):
    """a @ b on the MXU: bf16 operands, f32 accumulation."""
    return jax.lax.dot_general(_bf16(a), _bf16(b), (((1,), (0,)), ((), ())),
                               preferred_element_type=jnp.float32)


def bdot_tn(a, b):
    """a^T @ b (contract axis 0 of both) without materializing a transpose."""
    return jax.lax.dot_general(_bf16(a), _bf16(b), (((0,), (0,)), ((), ())),
                               preferred_element_type=jnp.float32)


def bdot_nt(a, b):
    """a @ b^T (contract axis 1 of both) without materializing a transpose."""
    return jax.lax.dot_general(_bf16(a), _bf16(b), (((1,), (1,)), ((), ())),
                               preferred_element_type=jnp.float32)


def mpnn_kernel(x_ref, e_ref, h_ref, w_ref,
                wn_t_ref, bn_ref, we_t_ref, be_ref,
                wlin_ref, u_ref, vt_ref, bias_ref,
                xres_ref, eres_ref):
    X = x_ref[...]            # (N, Dp) bf16 (matmul-only operand), lanes padded to 128
    E = e_ref[...]            # (M, Dp) f32
    H = h_ref[...]            # (N, M)  f32, binary incidence matrix
    w = w_ref[...]            # (1, M)  f32 hyperedge weights

    N, Dp = X.shape
    heads = u_ref.shape[1]

    # ---- shared degree math (H is {0,1} => edge_deg == B; guarded EUP reciprocals) ----
    deg_e = jnp.sum(H, axis=0, keepdims=True)                          # (1, M)
    recip_e = jnp.where(deg_e > 0.0, pl.reciprocal(deg_e, approx=True), 0.0)
    d_deg = jnp.sum(H * w, axis=1, keepdims=True)                      # (N, 1)
    d_inv = jnp.where(d_deg > 0.0, pl.reciprocal(d_deg, approx=True), 0.0)

    # ---- compute_edge_feat:  E_res = deg^-1 * H^T node_ffn(X) + edge_ffn(E) + E ----
    X_trans = bdot(X, wn_t_ref[...]) + bn_ref[...]                     # node_ffn(X): (N, Dp)
    Hn = H * recip_e                                                   # fold 1/deg into H's columns
    agg = bdot_tn(Hn, X_trans)                                         # (M, Dp), no H^T relayout
    E_res = agg + bdot(E, we_t_ref[...]) + be_ref[...] + E
    eres_ref[...] = E_res                                              # lane-dense store (Dp = 128k)

    # ---- HypergraphConv (attention, heads packed along lanes, concat=False) ----
    Xh_all = bdot(X, wlin_ref[...])                                    # (N, heads*Dp): one lane-dense matmul
    sn_all = bdot(X, u_ref[...])                                       # (N, heads): <x_h, att1_h> via folded vectors
    se_all = bdot_nt(vt_ref[...], E_res)                               # (heads, M): <e_h, att2_h> via folded vectors

    incident = H > 0.0
    acc = jnp.zeros((N, Dp), jnp.float32)
    for hh in range(heads):                                            # static unrolled (small head count)
        Xh = Xh_all[:, hh * Dp:(hh + 1) * Dp]                          # aligned 128-lane slab per head
        alpha = sn_all[:, hh:hh + 1] + se_all[hh:hh + 1, :]            # (N, M)
        alpha = jnp.where(alpha > 0.0, alpha, NEG_SLOPE * alpha)       # leaky_relu
        alpha = jnp.where(incident, alpha, -1e30)                      # mask once

        # softmax over nodes within each hyperedge (attention_mode='node')
        a_max = jnp.max(alpha, axis=0, keepdims=True)                  # (1, M)
        ex = jnp.exp(alpha - a_max)                                    # masked entries underflow to 0
        denom = jnp.sum(ex, axis=0, keepdims=True) + 1e-16
        A = ex * pl.reciprocal(denom, approx=True)                     # (N, M)
        # TODO(synk): F.dropout on attention weights skipped (eval-mode forward).

        oe = bdot_tn(A * recip_e, Xh)                                  # B^-1 * (alpha.H)^T x  -> (M, Dp)
        acc = acc + bdot(A, oe)                                        # (alpha.H) out_e, D^-1 applied below
    scale = d_inv * (1.0 / heads)                                      # D^-1 and head-mean fused, once
    xres_ref[...] = acc * scale + bias_ref[...]


def mpnn_forward(X, E, H, edge_weight, params, heads):
    N, D = X.shape
    M = E.shape[0]
    LANE = 128
    Dp = ((D + LANE - 1) // LANE) * LANE        # pad feature dim to full lanes => lane-dense loads/stores
    f32, bf16 = jnp.float32, jnp.bfloat16

    def pad_lane(a):
        return jnp.pad(a, ((0, 0), (0, Dp - a.shape[1])))

    Xp = pad_lane(X).astype(bf16)                # matmul-only operand -> ship as bf16
    Ep = pad_lane(E).astype(f32)
    bn = pad_lane(params["bn"].reshape(1, D))
    be = pad_lane(params["be"].reshape(1, D))
    bias = pad_lane(params["bias"].reshape(1, D))

    wn_t = jnp.zeros((Dp, Dp), f32).at[:D, :D].set(params["wn"].T)     # node_ffn.weight^T, padded
    we_t = jnp.zeros((Dp, Dp), f32).at[:D, :D].set(params["we"].T)     # edge_ffn.weight^T, padded

    # Pack all heads of conv.lin into one (Dp, heads*Dp) matrix.
    # Fold the attention vectors with the per-head lin weights (host-side, f32):
    #   u_h = Wlin_h^T @ att1_h   (node score),  v_h = Wlin_h^T @ att2_h   (edge score)
    wlin = params["wlin"]                                              # (heads*D, D), torch Linear layout
    att = params["att"]                                                # (heads, 2*D)
    wlin_packed = jnp.zeros((Dp, heads * Dp), f32)
    u_mat = jnp.zeros((Dp, heads), f32)
    vt_mat = jnp.zeros((heads, Dp), f32)
    for h in range(heads):
        Wh = wlin[h * D:(h + 1) * D, :]                                # (D, D)
        wlin_packed = wlin_packed.at[:D, h * Dp:h * Dp + D].set(Wh.T)
        u_mat = u_mat.at[:D, h].set(Wh.T @ att[h, :D])
        vt_mat = vt_mat.at[h, :D].set(Wh.T @ att[h, D:])

    vmem = pl.BlockSpec(memory_space=pltpu.MemorySpace.VMEM)
    out_shapes = (jax.ShapeDtypeStruct((N, Dp), f32),
                  jax.ShapeDtypeStruct((M, Dp), f32))
    xres_p, eres_p = pl.pallas_call(
        mpnn_kernel,
        out_shape=out_shapes,
        in_specs=[vmem] * 12,
        out_specs=(vmem, vmem),
        # explicit VMEM budget (v7x has 64 MiB physical); this kernel uses << 1 MiB
        compiler_params=pltpu.CompilerParams(vmem_limit_bytes=32 * 1024 * 1024),
    )(Xp, Ep, H.astype(f32), edge_weight.reshape(1, M).astype(f32),
      wn_t.astype(bf16), bn, we_t.astype(bf16), be,
      wlin_packed.astype(bf16), u_mat.astype(bf16), vt_mat.astype(bf16), bias)
    return xres_p[:, :D], eres_p[:, :D]


def mpnn_reference(X, E, H, w, params, heads):
    """Pure-JAX mirror of the PyTorch forward (eval mode).

    Matmul operands are rounded to bf16 (f32 accumulation) to match the kernel's MXU
    precision; remaining gaps vs. the kernel are the EUP approx reciprocals and the
    host-side f32 folding of the attention vectors (mathematically identical)."""
    D = X.shape[1]
    att1, att2 = params["att"][:, :D], params["att"][:, D:]
    wlin = params["wlin"]

    deg_e = H.sum(axis=0)
    recip_e = jnp.where(deg_e > 0, 1.0 / deg_e, 0.0)
    X_trans = bdot(X, params["wn"].T) + params["bn"]
    agg = recip_e[:, None] * bdot_tn(H, X_trans)
    E_res = agg + bdot(E, params["we"].T) + params["be"] + E

    d_deg = (H * w[None, :]).sum(axis=1)
    d_inv = jnp.where(d_deg > 0, 1.0 / d_deg, 0.0)

    acc = jnp.zeros_like(X)
    for h in range(heads):
        Wh_t = wlin[h * D:(h + 1) * D, :].T
        Xh = bdot(X, Wh_t)
        Eh = bdot(E_res, Wh_t)
        sn = bdot(Xh, att1[h].reshape(D, 1))                 # (N, 1)
        se = bdot(Eh, att2[h].reshape(D, 1))                 # (M, 1)
        alpha = sn + se.T
        alpha = jnp.where(alpha > 0, alpha, NEG_SLOPE * alpha)
        alpha = jnp.where(H > 0, alpha, -1e30)
        amax = alpha.max(axis=0, keepdims=True)
        ex = jnp.exp(alpha - amax)
        A = ex / (ex.sum(axis=0, keepdims=True) + 1e-16)
        oe = recip_e[:, None] * bdot_tn(A, Xh)
        acc = acc + d_inv[:, None] * bdot(A, oe)
    X_res = acc / heads + params["bias"]
    return X_res, E_res


if __name__ == "__main__":
    N, M, D, HEADS = 16, 8, 32, 4   # n_items, n_hyperedges, embed_dim, n_heads

    key = jax.random.PRNGKey(0)
    kx, ke, kh, kw = jax.random.split(key, 4)
    X = jax.random.normal(kx, (N, D), jnp.float32)
    E = jax.random.normal(ke, (M, D), jnp.float32)
    # dense incidence matrix; guarantee every hyperedge has >= 1 node
    H = (jax.random.uniform(kh, (N, M)) < 0.4).astype(jnp.float32)
    H = H.at[jnp.arange(M) % N, jnp.arange(M)].set(1.0)
    edge_weight = jax.random.uniform(kw, (M,), jnp.float32, 0.5, 1.5)

    # deterministic parameter init (shapes follow nn.Linear / HypergraphConv)
    pkey = jax.random.PRNGKey(42)
    k1, k2, k3, k4, k5, k6 = jax.random.split(pkey, 6)
    scale = 1.0 / jnp.sqrt(D)
    params = dict(
        wn=jax.random.normal(k1, (D, D), jnp.float32) * scale,            # node_ffn.weight
        bn=jax.random.normal(k2, (D,), jnp.float32) * 0.1,                # node_ffn.bias
        we=jax.random.normal(k3, (D, D), jnp.float32) * scale,            # edge_ffn.weight
        be=jax.random.normal(k4, (D,), jnp.float32) * 0.1,                # edge_ffn.bias
        wlin=jax.random.normal(k5, (HEADS * D, D), jnp.float32) * scale,  # conv.lin.weight (no bias)
        att=jax.random.normal(k6, (HEADS, 2 * D), jnp.float32) * scale,   # conv.att (1,h,2D) squeezed
        bias=jnp.zeros((D,), jnp.float32),                                # conv.bias (concat=False)
    )

    X_res, E_res = mpnn_forward(X, E, H, edge_weight, params, HEADS)
    jax.block_until_ready((X_res, E_res))

    X_ref, E_ref = mpnn_reference(X, E, H, edge_weight, params, HEADS)
    # tolerance covers bf16 MXU operands, EUP approx reciprocals, and the (mathematically
    # exact) host-side folding of attention vectors vs. the two-step bf16 reference path
    assert jnp.allclose(X_res, X_ref, rtol=2e-2, atol=5e-3), "X_res mismatch"
    assert jnp.allclose(E_res, E_ref, rtol=2e-2, atol=1e-3), "E_res mismatch"

    print("KERNEL_OK")
</pallas_src>

<mosaic_0001>
module attributes {stable_mosaic.version = 11 : i64} {
  func.func @mpnn_kernel(%arg0: memref<16x128xbf16, #tpu.memory_space<vmem>>, %arg1: memref<8x128xf32, #tpu.memory_space<vmem>>, %arg2: memref<16x8xf32, #tpu.memory_space<vmem>>, %arg3: memref<1x8xf32, #tpu.memory_space<vmem>>, %arg4: memref<128x128xbf16, #tpu.memory_space<vmem>>, %arg5: memref<1x128xf32, #tpu.memory_space<vmem>>, %arg6: memref<128x128xbf16, #tpu.memory_space<vmem>>, %arg7: memref<1x128xf32, #tpu.memory_space<vmem>>, %arg8: memref<128x512xbf16, #tpu.memory_space<vmem>>, %arg9: memref<128x4xbf16, #tpu.memory_space<vmem>>, %arg10: memref<4x128xbf16, #tpu.memory_space<vmem>>, %arg11: memref<1x128xf32, #tpu.memory_space<vmem>>, %arg12: memref<16x128xf32, #tpu.memory_space<vmem>>, %arg13: memref<8x128xf32, #tpu.memory_space<vmem>>) attributes {dimension_semantics = [], scalar_prefetch = 0 : i64, scratch_operands = 0 : i64, tpu.core_type = #tpu.core_type<tc>} {
    %c0 = arith.constant 0 : index
    %c0_0 = arith.constant 0 : index
    %0 = vector.load %arg0[%c0, %c0_0] : memref<16x128xbf16, #tpu.memory_space<vmem>>, vector<16x128xbf16>
    %c0_1 = arith.constant 0 : index
    %c0_2 = arith.constant 0 : index
    %1 = vector.load %arg1[%c0_1, %c0_2] : memref<8x128xf32, #tpu.memory_space<vmem>>, vector<8x128xf32>
    %c0_3 = arith.constant 0 : index
    %c0_4 = arith.constant 0 : index
    %2 = vector.load %arg2[%c0_3, %c0_4] : memref<16x8xf32, #tpu.memory_space<vmem>>, vector<16x8xf32>
    %c0_5 = arith.constant 0 : index
    %c0_6 = arith.constant 0 : index
    %3 = vector.load %arg3[%c0_5, %c0_6] : memref<1x8xf32, #tpu.memory_space<vmem>>, vector<1x8xf32>
    %cst = arith.constant dense<0.000000e+00> : vector<8xf32>
    %4 = vector.multi_reduction <add>, %2, %cst [0] : vector<16x8xf32> to vector<8xf32>
    %5 = vector.shape_cast %4 : vector<8xf32> to vector<1x8xf32>
    %cst_7 = arith.constant 0.000000e+00 : f32
    %6 = vector.broadcast %cst_7 : f32 to vector<1x8xf32>
    %7 = arith.cmpf ogt, %5, %6 : vector<1x8xf32>
    %8 = tpu.reciprocal %5 {approx = true} : vector<1x8xf32> -> vector<1x8xf32>
    %cst_8 = arith.constant 0.000000e+00 : f32
    %9 = vector.broadcast %cst_8 : f32 to vector<1x8xf32>
    %10 = arith.select %7, %8, %9 : vector<1x8xi1>, vector<1x8xf32>
    %11 = vector.broadcast %3 : vector<1x8xf32> to vector<16x8xf32>
    %12 = arith.mulf %2, %11 : vector<16x8xf32>
    %cst_9 = arith.constant dense<0.000000e+00> : vector<16xf32>
    %13 = vector.multi_reduction <add>, %12, %cst_9 [1] : vector<16x8xf32> to vector<16xf32>
    %14 = vector.shape_cast %13 : vector<16xf32> to vector<16x1xf32>
    %cst_10 = arith.constant 0.000000e+00 : f32
    %15 = vector.broadcast %cst_10 : f32 to vector<16x1xf32>
    %16 = arith.cmpf ogt, %14, %15 : vector<16x1xf32>
    %17 = tpu.reciprocal %14 {approx = true} : vector<16x1xf32> -> vector<16x1xf32>
    %cst_11 = arith.constant 0.000000e+00 : f32
    %18 = vector.broadcast %cst_11 : f32 to vector<16x1xf32>
    %19 = arith.select %16, %17, %18 : vector<16x1xi1>, vector<16x1xf32>
    %c0_12 = arith.constant 0 : index
    %c0_13 = arith.constant 0 : index
    %20 = vector.load %arg4[%c0_12, %c0_13] : memref<128x128xbf16, #tpu.memory_space<vmem>>, vector<128x128xbf16>
    %cst_14 = arith.constant dense<0.000000e+00> : vector<16x128xf32>
    %21 = tpu.matmul %0, %20, %cst_14 {dimension_numbers = #tpu.dot_dimension_numbers<[1], [0], [0], [1], [0, 0, 1, 1], [], []>} : vector<16x128xbf16>, vector<128x128xbf16>, vector<16x128xf32> -> vector<16x128xf32>
    %c0_15 = arith.constant 0 : index
    %c0_16 = arith.constant 0 : index
    %22 = vector.load %arg5[%c0_15, %c0_16] : memref<1x128xf32, #tpu.memory_space<vmem>>, vector<1x128xf32>
    %23 = vector.broadcast %22 : vector<1x128xf32> to vector<16x128xf32>
    %24 = arith.addf %21, %23 : vector<16x128xf32>
    %25 = vector.broadcast %10 : vector<1x8xf32> to vector<16x8xf32>
    %26 = arith.mulf %2, %25 : vector<16x8xf32>
    %27 = arith.truncf %26 : vector<16x8xf32> to vector<16x8xbf16>
    %28 = arith.truncf %24 : vector<16x128xf32> to vector<16x128xbf16>
    %cst_17 = arith.constant dense<0.000000e+00> : vector<8x128xf32>
    %29 = tpu.matmul %27, %28, %cst_17 {dimension_numbers = #tpu.dot_dimension_numbers<[0], [0], [1], [1], [0, 1, 1, 1], [], []>} : vector<16x8xbf16>, vector<16x128xbf16>, vector<8x128xf32> -> vector<8x128xf32>
    %c0_18 = arith.constant 0 : index
    %c0_19 = arith.constant 0 : index
    %30 = vector.load %arg6[%c0_18, %c0_19] : memref<128x128xbf16, #tpu.memory_space<vmem>>, vector<128x128xbf16>
    %31 = arith.truncf %1 : vector<8x128xf32> to vector<8x128xbf16>
    %cst_20 = arith.constant dense<0.000000e+00> : vector<8x128xf32>
    %32 = tpu.matmul %31, %30, %cst_20 {dimension_numbers = #tpu.dot_dimension_numbers<[1], [0], [0], [1], [0, 0, 1, 1], [], []>} : vector<8x128xbf16>, vector<128x128xbf16>, vector<8x128xf32> -> vector<8x128xf32>
    %33 = arith.addf %29, %32 : vector<8x128xf32>
    %c0_21 = arith.constant 0 : index
    %c0_22 = arith.constant 0 : index
    %34 = vector.load %arg7[%c0_21, %c0_22] : memref<1x128xf32, #tpu.memory_space<vmem>>, vector<1x128xf32>
    %35 = vector.broadcast %34 : vector<1x128xf32> to vector<8x128xf32>
    %36 = arith.addf %33, %35 : vector<8x128xf32>
    %37 = arith.addf %36, %1 : vector<8x128xf32>
    %c0_23 = arith.constant 0 : index
    %c0_24 = arith.constant 0 : index
    %38 = vector.load %arg13[%c0_23, %c0_24] : memref<8x128xf32, #tpu.memory_space<vmem>>, vector<8x128xf32>
    tpu.vector_store %arg13[%c0_23, %c0_24], %37 {strides = array<i32>} : memref<8x128xf32, #tpu.memory_space<vmem>>, vector<8x128xf32>,
    %c0_25 = arith.constant 0 : index
    %c0_26 = arith.constant 0 : index
    %39 = vector.load %arg8[%c0_25, %c0_26] : memref<128x512xbf16, #tpu.memory_space<vmem>>, vector<128x512xbf16>
    %cst_27 = arith.constant dense<0.000000e+00> : vector<16x512xf32>
    %40 = tpu.matmul %0, %39, %cst_27 {dimension_numbers = #tpu.dot_dimension_numbers<[1], [0], [0], [1], [0, 0, 1, 1], [], []>} : vector<16x128xbf16>, vector<128x512xbf16>, vector<16x512xf32> -> vector<16x512xf32>
    %c0_28 = arith.constant 0 : index
    %c0_29 = arith.constant 0 : index
    %41 = vector.load %arg9[%c0_28, %c0_29] : memref<128x4xbf16, #tpu.memory_space<vmem>>, vector<128x4xbf16>
    %cst_30 = arith.constant dense<0.000000e+00> : vector<16x4xf32>
    %42 = tpu.matmul %0, %41, %cst_30 {dimension_numbers = #tpu.dot_dimension_numbers<[1], [0], [0], [1], [0, 0, 1, 1], [], []>} : vector<16x128xbf16>, vector<128x4xbf16>, vector<16x4xf32> -> vector<16x4xf32>
    %c0_31 = arith.constant 0 : index
    %c0_32 = arith.constant 0 : index
    %43 = vector.load %arg10[%c0_31, %c0_32] : memref<4x128xbf16, #tpu.memory_space<vmem>>, vector<4x128xbf16>
    %44 = arith.truncf %37 : vector<8x128xf32> to vector<8x128xbf16>
    %cst_33 = arith.constant dense<0.000000e+00> : vector<4x8xf32>
    %45 = tpu.matmul %43, %44, %cst_33 {dimension_numbers = #tpu.dot_dimension_numbers<[1], [1], [0], [0], [0, 0, 1, 0], [], []>} : vector<4x128xbf16>, vector<8x128xbf16>, vector<4x8xf32> -> vector<4x8xf32>
    %cst_34 = arith.constant 0.000000e+00 : f32
    %46 = vector.broadcast %cst_34 : f32 to vector<16x8xf32>
    %47 = arith.cmpf ogt, %2, %46 : vector<16x8xf32>
    %cst_35 = arith.constant 0.000000e+00 : f32
    %48 = vector.broadcast %cst_35 : f32 to vector<16x128xf32>
    %49 = vector.extract_strided_slice %40 {offsets = [0, 0], sizes = [16, 128], strides = [1, 1]} : vector<16x512xf32> to vector<16x128xf32>
    %50 = vector.extract_strided_slice %42 {offsets = [0, 0], sizes = [16, 1], strides = [1, 1]} : vector<16x4xf32> to vector<16x1xf32>
    %51 = vector.extract_strided_slice %45 {offsets = [0, 0], sizes = [1, 8], strides = [1, 1]} : vector<4x8xf32> to vector<1x8xf32>
    %52 = vector.broadcast %50 : vector<16x1xf32> to vector<16x8xf32>
    %53 = vector.broadcast %51 : vector<1x8xf32> to vector<16x8xf32>
    %54 = arith.addf %52, %53 : vector<16x8xf32>
    %cst_36 = arith.constant 0.000000e+00 : f32
    %55 = vector.broadcast %cst_36 : f32 to vector<16x8xf32>
    %56 = arith.cmpf ogt, %54, %55 : vector<16x8xf32>
    %cst_37 = arith.constant 2.000000e-01 : f32
    %57 = vector.broadcast %cst_37 : f32 to vector<16x8xf32>
    %58 = arith.mulf %57, %54 : vector<16x8xf32>
    %59 = arith.select %56, %54, %58 : vector<16x8xi1>, vector<16x8xf32>
    %cst_38 = arith.constant -1.000000e+30 : f32
    %60 = vector.broadcast %cst_38 : f32 to vector<16x8xf32>
    %61 = arith.select %47, %59, %60 : vector<16x8xi1>, vector<16x8xf32>
    %cst_39 = arith.constant dense<0xFF800000> : vector<8xf32>
    %62 = vector.multi_reduction <maximumf>, %61, %cst_39 [0] : vector<16x8xf32> to vector<8xf32>
    %63 = vector.shape_cast %62 : vector<8xf32> to vector<1x8xf32>
    %64 = vector.broadcast %63 : vector<1x8xf32> to vector<16x8xf32>
    %65 = arith.subf %61, %64 : vector<16x8xf32>
    %66 = math.exp %65 : vector<16x8xf32>
    %cst_40 = arith.constant dense<0.000000e+00> : vector<8xf32>
    %67 = vector.multi_reduction <add>, %66, %cst_40 [0] : vector<16x8xf32> to vector<8xf32>
    %68 = vector.shape_cast %67 : vector<8xf32> to vector<1x8xf32>
    %cst_41 = arith.constant 1.000000e-16 : f32
    %69 = vector.broadcast %cst_41 : f32 to vector<1x8xf32>
    %70 = arith.addf %68, %69 : vector<1x8xf32>
    %71 = tpu.reciprocal %70 {approx = true} : vector<1x8xf32> -> vector<1x8xf32>
    %72 = vector.broadcast %71 : vector<1x8xf32> to vector<16x8xf32>
    %73 = arith.mulf %66, %72 : vector<16x8xf32>
    %74 = vector.broadcast %10 : vector<1x8xf32> to vector<16x8xf32>
    %75 = arith.mulf %73, %74 : vector<16x8xf32>
    %76 = arith.truncf %75 : vector<16x8xf32> to vector<16x8xbf16>
    %77 = arith.truncf %49 : vector<16x128xf32> to vector<16x128xbf16>
    %cst_42 = arith.constant dense<0.000000e+00> : vector<8x128xf32>
    %78 = tpu.matmul %76, %77, %cst_42 {dimension_numbers = #tpu.dot_dimension_numbers<[0], [0], [1], [1], [0, 1, 1, 1], [], []>} : vector<16x8xbf16>, vector<16x128xbf16>, vector<8x128xf32> -> vector<8x128xf32>
    %79 = arith.truncf %73 : vector<16x8xf32> to vector<16x8xbf16>
    %80 = arith.truncf %78 : vector<8x128xf32> to vector<8x128xbf16>
    %cst_43 = arith.constant dense<0.000000e+00> : vector<16x128xf32>
    %81 = tpu.matmul %79, %80, %cst_43 {dimension_numbers = #tpu.dot_dimension_numbers<[1], [0], [0], [1], [0, 0, 1, 1], [], []>} : vector<16x8xbf16>, vector<8x128xbf16>, vector<16x128xf32> -> vector<16x128xf32>
    %82 = arith.addf %48, %81 : vector<16x128xf32>
    %83 = vector.extract_strided_slice %40 {offsets = [0, 128], sizes = [16, 128], strides = [1, 1]} : vector<16x512xf32> to vector<16x128xf32>
    %84 = vector.extract_strided_slice %42 {offsets = [0, 1], sizes = [16, 1], strides = [1, 1]} : vector<16x4xf32> to vector<16x1xf32>
    %85 = vector.extract_strided_slice %45 {offsets = [1, 0], sizes = [1, 8], strides = [1, 1]} : vector<4x8xf32> to vector<1x8xf32>
    %86 = vector.broadcast %84 : vector<16x1xf32> to vector<16x8xf32>
    %87 = vector.broadcast %85 : vector<1x8xf32> to vector<16x8xf32>
    %88 = arith.addf %86, %87 : vector<16x8xf32>
    %cst_44 = arith.constant 0.000000e+00 : f32
    %89 = vector.broadcast %cst_44 : f32 to vector<16x8xf32>
    %90 = arith.cmpf ogt, %88, %89 : vector<16x8xf32>
    %cst_45 = arith.constant 2.000000e-01 : f32
    %91 = vector.broadcast %cst_45 : f32 to vector<16x8xf32>
    %92 = arith.mulf %91, %88 : vector<16x8xf32>
    %93 = arith.select %90, %88, %92 : vector<16x8xi1>, vector<16x8xf32>
    %cst_46 = arith.constant -1.000000e+30 : f32
    %94 = vector.broadcast %cst_46 : f32 to vector<16x8xf32>
    %95 = arith.select %47, %93, %94 : vector<16x8xi1>, vector<16x8xf32>
    %cst_47 = arith.constant dense<0xFF800000> : vector<8xf32>
    %96 = vector.multi_reduction <maximumf>, %95, %cst_47 [0] : vector<16x8xf32> to vector<8xf32>
    %97 = vector.shape_cast %96 : vector<8xf32> to vector<1x8xf32>
    %98 = vector.broadcast %97 : vector<1x8xf32> to vector<16x8xf32>
    %99 = arith.subf %95, %98 : vector<16x8xf32>
    %100 = math.exp %99 : vector<16x8xf32>
    %cst_48 = arith.constant dense<0.000000e+00> : vector<8xf32>
    %101 = vector.multi_reduction <add>, %100, %cst_48 [0] : vector<16x8xf32> to vector<8xf32>
    %102 = vector.shape_cast %101 : vector<8xf32> to vector<1x8xf32>
    %cst_49 = arith.constant 1.000000e-16 : f32
    %103 = vector.broadcast %cst_49 : f32 to vector<1x8xf32>
    %104 = arith.addf %102, %103 : vector<1x8xf32>
    %105 = tpu.reciprocal %104 {approx = true} : vector<1x8xf32> -> vector<1x8xf32>
    %106 = vector.broadcast %105 : vector<1x8xf32> to vector<16x8xf32>
    %107 = arith.mulf %100, %106 : vector<16x8xf32>
    %108 = vector.broadcast %10 : vector<1x8xf32> to vector<16x8xf32>
    %109 = arith.mulf %107, %108 : vector<16x8xf32>
    %110 = arith.truncf %109 : vector<16x8xf32> to vector<16x8xbf16>
    %111 = arith.truncf %83 : vector<16x128xf32> to vector<16x128xbf16>
    %cst_50 = arith.constant dense<0.000000e+00> : vector<8x128xf32>
    %112 = tpu.matmul %110, %111, %cst_50 {dimension_numbers = #tpu.dot_dimension_numbers<[0], [0], [1], [1], [0, 1, 1, 1], [], []>} : vector<16x8xbf16>, vector<16x128xbf16>, vector<8x128xf32> -> vector<8x128xf32>
    %113 = arith.truncf %107 : vector<16x8xf32> to vector<16x8xbf16>
    %114 = arith.truncf %112 : vector<8x128xf32> to vector<8x128xbf16>
    %cst_51 = arith.constant dense<0.000000e+00> : vector<16x128xf32>
    %115 = tpu.matmul %113, %114, %cst_51 {dimension_numbers = #tpu.dot_dimension_numbers<[1], [0], [0], [1], [0, 0, 1, 1], [], []>} : vector<16x8xbf16>, vector<8x128xbf16>, vector<16x128xf32> -> vector<16x128xf32>
    %116 = arith.addf %82, %115 : vector<16x128xf32>
    %117 = vector.extract_strided_slice %40 {offsets = [0, 256], sizes = [16, 128], strides = [1, 1]} : vector<16x512xf32> to vector<16x128xf32>
    %118 = vector.extract_strided_slice %42 {offsets = [0, 2], sizes = [16, 1], strides = [1, 1]} : vector<16x4xf32> to vector<16x1xf32>
    %119 = vector.extract_strided_slice %45 {offsets = [2, 0], sizes = [1, 8], strides = [1, 1]} : vector<4x8xf32> to vector<1x8xf32>
    %120 = vector.broadcast %118 : vector<16x1xf32> to vector<16x8xf32>
    %121 = vector.broadcast %119 : vector<1x8xf32> to vector<16x8xf32>
    %122 = arith.addf %120, %121 : vector<16x8xf32>
    %cst_52 = arith.constant 0.000000e+00 : f32
    %123 = vector.broadcast %cst_52 : f32 to vector<16x8xf32>
    %124 = arith.cmpf ogt, %122, %123 : vector<16x8xf32>
    %cst_53 = arith.constant 2.000000e-01 : f32
    %125 = vector.broadcast %cst_53 : f32 to vector<16x8xf32>
    %126 = arith.mulf %125, %122 : vector<16x8xf32>
    %127 = arith.select %124, %122, %126 : vector<16x8xi1>, vector<16x8xf32>
    %cst_54 = arith.constant -1.000000e+30 : f32
    %128 = vector.broadcast %cst_54 : f32 to vector<16x8xf32>
    %129 = arith.select %47, %127, %128 : vector<16x8xi1>, vector<16x8xf32>
    %cst_55 = arith.constant dense<0xFF800000> : vector<8xf32>
    %130 = vector.multi_reduction <maximumf>, %129, %cst_55 [0] : vector<16x8xf32> to vector<8xf32>
    %131 = vector.shape_cast %130 : vector<8xf32> to vector<1x8xf32>
    %132 = vector.broadcast %131 : vector<1x8xf32> to vector<16x8xf32>
    %133 = arith.subf %129, %132 : vector<16x8xf32>
    %134 = math.exp %133 : vector<16x8xf32>
    %cst_56 = arith.constant dense<0.000000e+00> : vector<8xf32>
    %135 = vector.multi_reduction <add>, %134, %cst_56 [0] : vector<16x8xf32> to vector<8xf32>
    %136 = vector.shape_cast %135 : vector<8xf32> to vector<1x8xf32>
    %cst_57 = arith.constant 1.000000e-16 : f32
    %137 = vector.broadcast %cst_57 : f32 to vector<1x8xf32>
    %138 = arith.addf %136, %137 : vector<1x8xf32>
    %139 = tpu.reciprocal %138 {approx = true} : vector<1x8xf32> -> vector<1x8xf32>
    %140 = vector.broadcast %139 : vector<1x8xf32> to vector<16x8xf32>
    %141 = arith.mulf %134, %140 : vector<16x8xf32>
    %142 = vector.broadcast %10 : vector<1x8xf32> to vector<16x8xf32>
    %143 = arith.mulf %141, %142 : vector<16x8xf32>
    %144 = arith.truncf %143 : vector<16x8xf32> to vector<16x8xbf16>
    %145 = arith.truncf %117 : vector<16x128xf32> to vector<16x128xbf16>
    %cst_58 = arith.constant dense<0.000000e+00> : vector<8x128xf32>
    %146 = tpu.matmul %144, %145, %cst_58 {dimension_numbers = #tpu.dot_dimension_numbers<[0], [0], [1], [1], [0, 1, 1, 1], [], []>} : vector<16x8xbf16>, vector<16x128xbf16>, vector<8x128xf32> -> vector<8x128xf32>
    %147 = arith.truncf %141 : vector<16x8xf32> to vector<16x8xbf16>
    %148 = arith.truncf %146 : vector<8x128xf32> to vector<8x128xbf16>
    %cst_59 = arith.constant dense<0.000000e+00> : vector<16x128xf32>
    %149 = tpu.matmul %147, %148, %cst_59 {dimension_numbers = #tpu.dot_dimension_numbers<[1], [0], [0], [1], [0, 0, 1, 1], [], []>} : vector<16x8xbf16>, vector<8x128xbf16>, vector<16x128xf32> -> vector<16x128xf32>
    %150 = arith.addf %116, %149 : vector<16x128xf32>
    %151 = vector.extract_strided_slice %40 {offsets = [0, 384], sizes = [16, 128], strides = [1, 1]} : vector<16x512xf32> to vector<16x128xf32>
    %152 = vector.extract_strided_slice %42 {offsets = [0, 3], sizes = [16, 1], strides = [1, 1]} : vector<16x4xf32> to vector<16x1xf32>
    %153 = vector.extract_strided_slice %45 {offsets = [3, 0], sizes = [1, 8], strides = [1, 1]} : vector<4x8xf32> to vector<1x8xf32>
    %154 = vector.broadcast %152 : vector<16x1xf32> to vector<16x8xf32>
    %155 = vector.broadcast %153 : vector<1x8xf32> to vector<16x8xf32>
    %156 = arith.addf %154, %155 : vector<16x8xf32>
    %cst_60 = arith.constant 0.000000e+00 : f32
    %157 = vector.broadcast %cst_60 : f32 to vector<16x8xf32>
    %158 = arith.cmpf ogt, %156, %157 : vector<16x8xf32>
    %cst_61 = arith.constant 2.000000e-01 : f32
    %159 = vector.broadcast %cst_61 : f32 to vector<16x8xf32>
    %160 = arith.mulf %159, %156 : vector<16x8xf32>
    %161 = arith.select %158, %156, %160 : vector<16x8xi1>, vector<16x8xf32>
    %cst_62 = arith.constant -1.000000e+30 : f32
    %162 = vector.broadcast %cst_62 : f32 to vector<16x8xf32>
    %163 = arith.select %47, %161, %162 : vector<16x8xi1>, vector<16x8xf32>
    %cst_63 = arith.constant dense<0xFF800000> : vector<8xf32>
    %164 = vector.multi_reduction <maximumf>, %163, %cst_63 [0] : vector<16x8xf32> to vector<8xf32>
    %165 = vector.shape_cast %164 : vector<8xf32> to vector<1x8xf32>
    %166 = vector.broadcast %165 : vector<1x8xf32> to vector<16x8xf32>
    %167 = arith.subf %163, %166 : vector<16x8xf32>
    %168 = math.exp %167 : vector<16x8xf32>
    %cst_64 = arith.constant dense<0.000000e+00> : vector<8xf32>
    %169 = vector.multi_reduction <add>, %168, %cst_64 [0] : vector<16x8xf32> to vector<8xf32>
    %170 = vector.shape_cast %169 : vector<8xf32> to vector<1x8xf32>
    %cst_65 = arith.constant 1.000000e-16 : f32
    %171 = vector.broadcast %cst_65 : f32 to vector<1x8xf32>
    %172 = arith.addf %170, %171 : vector<1x8xf32>
    %173 = tpu.reciprocal %172 {approx = true} : vector<1x8xf32> -> vector<1x8xf32>
    %174 = vector.broadcast %173 : vector<1x8xf32> to vector<16x8xf32>
    %175 = arith.mulf %168, %174 : vector<16x8xf32>
    %176 = vector.broadcast %10 : vector<1x8xf32> to vector<16x8xf32>
    %177 = arith.mulf %175, %176 : vector<16x8xf32>
    %178 = arith.truncf %177 : vector<16x8xf32> to vector<16x8xbf16>
    %179 = arith.truncf %151 : vector<16x128xf32> to vector<16x128xbf16>
    %cst_66 = arith.constant dense<0.000000e+00> : vector<8x128xf32>
    %180 = tpu.matmul %178, %179, %cst_66 {dimension_numbers = #tpu.dot_dimension_numbers<[0], [0], [1], [1], [0, 1, 1, 1], [], []>} : vector<16x8xbf16>, vector<16x128xbf16>, vector<8x128xf32> -> vector<8x128xf32>
    %181 = arith.truncf %175 : vector<16x8xf32> to vector<16x8xbf16>
    %182 = arith.truncf %180 : vector<8x128xf32> to vector<8x128xbf16>
    %cst_67 = arith.constant dense<0.000000e+00> : vector<16x128xf32>
    %183 = tpu.matmul %181, %182, %cst_67 {dimension_numbers = #tpu.dot_dimension_numbers<[1], [0], [0], [1], [0, 0, 1, 1], [], []>} : vector<16x8xbf16>, vector<8x128xbf16>, vector<16x128xf32> -> vector<16x128xf32>
    %184 = arith.addf %150, %183 : vector<16x128xf32>
    %cst_68 = arith.constant 2.500000e-01 : f32
    %185 = vector.broadcast %cst_68 : f32 to vector<16x1xf32>
    %186 = arith.mulf %19, %185 : vector<16x1xf32>
    %187 = vector.broadcast %186 : vector<16x1xf32> to vector<16x128xf32>
    %188 = arith.mulf %184, %187 : vector<16x128xf32>
    %c0_69 = arith.constant 0 : index
    %c0_70 = arith.constant 0 : index
    %189 = vector.load %arg11[%c0_69, %c0_70] : memref<1x128xf32, #tpu.memory_space<vmem>>, vector<1x128xf32>
    %190 = vector.broadcast %189 : vector<1x128xf32> to vector<16x128xf32>
    %191 = arith.addf %188, %190 : vector<16x128xf32>
    %c0_71 = arith.constant 0 : index
    %c0_72 = arith.constant 0 : index
    %192 = vector.load %arg12[%c0_71, %c0_72] : memref<16x128xf32, #tpu.memory_space<vmem>>, vector<16x128xf32>
    tpu.vector_store %arg12[%c0_71, %c0_72], %191 {strides = array<i32>} : memref<16x128xf32, #tpu.memory_space<vmem>>, vector<16x128xf32>,
    return
  }
}

</mosaic_0001>

<llo_original>
// kernel: tpu_custom_call.1
$region0: #{tpu_custom_call.1}
  #allocation0 [shape = 'u32[]', space=smem, size = 0x4, offset = 0x4, fixed_abs, tag = 'smem constant byte address 0x4 - core index']
  #allocation1 [shape = 'u32[144,128]{1,0:T(1,128)}', space=vmem, size = 0x12000, scoped, tag = 'internal scratch']
  %s0 = inlined_call_operand.vmem [shape: bf16[16,128], index: 0, kind: input, shape index: {}]
  %s1 = inlined_call_operand.vmem [shape: f32[8,128], index: 1, kind: input, shape index: {}]
  %s2 = inlined_call_operand.vmem [shape: f32[16,8], index: 2, kind: input, shape index: {}]
  %s3 = inlined_call_operand.vmem [shape: f32[1,8], index: 3, kind: input, shape index: {}]
  %s4 = inlined_call_operand.vmem [shape: bf16[128,128], index: 4, kind: input, shape index: {}]
  %s5 = inlined_call_operand.vmem [shape: f32[1,128], index: 5, kind: input, shape index: {}]
  %s6 = inlined_call_operand.hbm [shape: bf16[128,128], index: 6, kind: input, shape index: {}]
  %s7 = inlined_call_operand.vmem [shape: f32[1,128], index: 7, kind: input, shape index: {}]
  %s8 = inlined_call_operand.hbm [shape: bf16[128,512], index: 8, kind: input, shape index: {}]
  %s9 = inlined_call_operand.vmem [shape: bf16[128,4], index: 9, kind: input, shape index: {}]
  %s10 = inlined_call_operand.vmem [shape: bf16[4,128], index: 10, kind: input, shape index: {}]
  %s11 = inlined_call_operand.vmem [shape: f32[1,128], index: 11, kind: input, shape index: {}]
  %s12 = inlined_call_operand.hbm [shape: f32[16,128], index: 12, kind: output, shape index: {0}]
  %s13 = inlined_call_operand.hbm [shape: f32[8,128], index: 13, kind: output, shape index: {1}]
  %14 = xla_tuple %s12, %s13
  %s15 = sld [smem:[#allocation0]]
  $region74: #{tpu_custom_call.1} parent=0
    _
  %s17 = ssub.s32 1, %s15
  %s18 = scalar_select 0, %s17, %s15
  $region1: #{tpu_custom_call.1} parent=0
    #allocation2 [shape = 'u8[32768]{0}', space=vmem, size = 0x8000, scoped, tag = 'input window, operand 6, single buffered']
    #allocation3 [shape = 's32[1]{0}', space=sflag, size = 0x4, scoped, tag = 'scoped memory for tpu_custom_call.1']
    #allocation4 [shape = 's32[1]{0}', space=sflag, size = 0x4, scoped, tag = 'scoped memory for tpu_custom_call.1']
    #allocation5 [shape = 'u8[131072]{0}', space=vmem, size = 0x20000, scoped, tag = 'input window, operand 8, single buffered']
    #allocation6 [shape = 's32[1]{0}', space=sflag, size = 0x4, scoped, tag = 'scoped memory for tpu_custom_call.1']
    #allocation7 [shape = 'u8[8192]{0}', space=vmem, size = 0x2000, scoped, tag = 'output window, operand 0, single buffered']
    #allocation8 [shape = 'u8[4096]{0}', space=vmem, size = 0x1000, scoped, tag = 'output window, operand 1, single buffered']
    #allocation9 [shape = 's32[1]{0}', space=sflag, size = 0x4, scoped, tag = 'scoped memory for tpu_custom_call.1']
    %19 = vsyncpa [#allocation3], 0
    %20 = vsyncpa [#allocation6], 0
    %21 = vsyncpa [#allocation4], 0
    %22 = vsyncpa [#allocation9], 0
    // Predicated region
    $region2: #{tpu_custom_call.1} parent=1 // pred_check
      _
    $region3: #{tpu_custom_call.1} parent=1 // pred_check_branch
      %24 = sbr.rel (0) target = $region5
    $region4: #{tpu_custom_call.1} parent=1 // pred_region
      _
    $region5: #{tpu_custom_call.1} parent=1 // pred_fallthru
      _
    // Predicated region
    $region6: #{tpu_custom_call.1} parent=1 // pred_check
      _
    $region7: #{tpu_custom_call.1} parent=1 // pred_check_branch
      %26 = sbr.rel (0) target = $region9
    $region8: #{tpu_custom_call.1} parent=1 // pred_region
      _
    $region9: #{tpu_custom_call.1} parent=1 // pred_fallthru
      _
    // Predicated region
    $region10: #{tpu_custom_call.1} parent=1 // pred_check
      _
    $region11: #{tpu_custom_call.1} parent=1 // pred_check_branch
      %28 = sbr.rel (0) target = $region13
    $region12: #{tpu_custom_call.1} parent=1 // pred_region
      _
    $region13: #{tpu_custom_call.1} parent=1 // pred_fallthru
      _
    // Predicated region
    $region14: #{tpu_custom_call.1} parent=1 // pred_check
      _
    $region15: #{tpu_custom_call.1} parent=1 // pred_check_branch
      %30 = sbr.rel (0) target = $region17
    $region16: #{tpu_custom_call.1} parent=1 // pred_region
      _
    $region17: #{tpu_custom_call.1} parent=1 // pred_fallthru
      _
    // Predicated region
    $region18: #{tpu_custom_call.1} parent=1 // pred_check
      _
    $region19: #{tpu_custom_call.1} parent=1 // pred_check_branch
      %32 = sbr.rel (0) target = $region21
    $region20: #{tpu_custom_call.1} parent=1 // pred_region
      _
    $region21: #{tpu_custom_call.1} parent=1 // pred_fallthru
      _
    // Predicated region
    $region22: #{tpu_custom_call.1} parent=1 // pred_check
      _
    $region23: #{tpu_custom_call.1} parent=1 // pred_check_branch
      %34 = sbr.rel (0) target = $region25
    $region24: #{tpu_custom_call.1} parent=1 // pred_region
      _
    $region25: #{tpu_custom_call.1} parent=1 // pred_fallthru
      _
    // Predicated region
    $region26: #{tpu_custom_call.1} parent=1 // pred_check
      _
    $region27: #{tpu_custom_call.1} parent=1 // pred_check_branch
      %36 = sbr.rel (0) target = $region29
    $region28: #{tpu_custom_call.1} parent=1 // pred_region
      %s38 = ssub.s32 1024, 1024
      %39 = vsyncadd [#allocation3], %s38
      %s40 = sshll.u32 [#allocation2], 4
      %s41 = int_to_ptr.vmem [resolvable:$true] %s40
      %46 = dma.hbm_to_vmem [thread:$0]  %s6, 1024, %s41, [#allocation3], 64, 64, 4
    $region29: #{tpu_custom_call.1} parent=1 // pred_fallthru
      _
    // Predicated region
    $region30: #{tpu_custom_call.1} parent=1 // pred_check
      _
    $region31: #{tpu_custom_call.1} parent=1 // pred_check_branch
      %48 = sbr.rel (0) target = $region33
    $region32: #{tpu_custom_call.1} parent=1 // pred_region
      _
    $region33: #{tpu_custom_call.1} parent=1 // pred_fallthru
      _
    // Predicated region
    $region34: #{tpu_custom_call.1} parent=1 // pred_check
      _
    $region35: #{tpu_custom_call.1} parent=1 // pred_check_branch
      %50 = sbr.rel (0) target = $region37
    $region36: #{tpu_custom_call.1} parent=1 // pred_region
      %s52 = ssub.s32 4096, 4096
      %53 = vsyncadd [#allocation6], %s52
      %s54 = sshll.u32 [#allocation5], 4
      %s55 = int_to_ptr.vmem [resolvable:$true] %s54
      %60 = dma.hbm_to_vmem [thread:$0]  %s8, 4096, %s55, [#allocation6], 256, 256, 16
    $region37: #{tpu_custom_call.1} parent=1 // pred_fallthru
      _
    // Predicated region
    $region38: #{tpu_custom_call.1} parent=1 // pred_check
      _
    $region39: #{tpu_custom_call.1} parent=1 // pred_check_branch
      %62 = sbr.rel (0) target = $region41
    $region40: #{tpu_custom_call.1} parent=1 // pred_region
      _
    $region41: #{tpu_custom_call.1} parent=1 // pred_fallthru
      _
    // Predicated region
    $region42: #{tpu_custom_call.1} parent=1 // pred_check
      _
    $region43: #{tpu_custom_call.1} parent=1 // pred_check_branch
      %64 = sbr.rel (0) target = $region45
    $region44: #{tpu_custom_call.1} parent=1 // pred_region
      _
    $region45: #{tpu_custom_call.1} parent=1 // pred_fallthru
      _
    // Predicated region
    $region46: #{tpu_custom_call.1} parent=1 // pred_check
      _
    $region47: #{tpu_custom_call.1} parent=1 // pred_check_branch
      %66 = sbr.rel (0) target = $region49
    $region48: #{tpu_custom_call.1} parent=1 // pred_region
      _
    $region49: #{tpu_custom_call.1} parent=1 // pred_fallthru
      _
    // Predicated region
    $region50: #{tpu_custom_call.1} parent=1 // pred_check
      _
    $region51: #{tpu_custom_call.1} parent=1 // pred_check_branch
      %68 = sbr.rel (0) target = $region53
    $region52: #{tpu_custom_call.1} parent=1 // pred_region
      %69 = dma.done [#allocation3], 1024
    $region53: #{tpu_custom_call.1} parent=1 // pred_fallthru
      _
    // Predicated region
    $region54: #{tpu_custom_call.1} parent=1 // pred_check
      _
    $region55: #{tpu_custom_call.1} parent=1 // pred_check_branch
      %71 = sbr.rel (0) target = $region57
    $region56: #{tpu_custom_call.1} parent=1 // pred_region
      %72 = dma.done [#allocation6], 4096
    $region57: #{tpu_custom_call.1} parent=1 // pred_fallthru
      _
    %v74 = vld [vmem:[%s0] sm:$0xf]
    %v75 = vld [vmem:[%s0 + $0x4] sm:$0xf]
    %v76 = vld [vmem:[%s1] sm:$0xff]
    %v77 = vld [vmem:[%s2] sm:$0xff]
    %v78 = vld [vmem:[%s2 + $0x8] sm:$0xff]
    %v79 = vld [vmem:[%s3] sm:$0x1]
    %vm80 = vcmask 64512
    %v81 = vsel %vm80, %v77, 0.0
    %v82 = vsel %vm80, %v78, 0.0
    %v83 = vadd.f32 %v81, %v82
    %v84 = vrot.slane %v83, 4
    %v85 = vadd.f32 %v83, %v84
    %v86 = vrot.slane %v85, 2
    %v87 = vadd.f32 %v85, %v86
    %v88 = vrot.slane %v87, 1
    %v89 = vadd.f32 %v87, %v88
    %vm90 = vcmp.gt.f32.partialorder %v89, 0.0
    %v91 = vrcp.pop %v89
    %v92 = vsel %vm90, %v91, 0.0
    %v94 = vlaneseq
    %v95 = vshrl.u32 %v94, 7
    %v96 = vsub.s32 0, %v95
    %v97 = vrot.slane %v79, %v96
    %v99 = vmul.f32 %v77, %v97
    %v100 = vmul.f32 %v78, %v97
    %v101 = vsel %vm80, %v99, 0.0
    %102 = vadd.xlane.f32.xlu0 %v101
    %v103 = vpop.xlane.xlu0 %102
    %v104 = vsel %vm80, %v100, 0.0
    %105 = vadd.xlane.f32.xlu0 %v104
    %v106 = vpop.xlane.xlu0 %105
    %vm107 = vcmp.gt.f32.partialorder %v103, 0.0
    %vm108 = vcmp.gt.f32.partialorder %v106, 0.0
    %v109 = vrcp.pop %v103
    %v110 = vrcp.pop %v106
    %v111 = vsel %vm107, %v109, 0.0
    %v112 = vsel %vm108, %v110, 0.0
    %v113 = vld [vmem:[%s4] sm:$0xf]
    %v114 = vld [vmem:[%s4 + $0x4] sm:$0xf]
    %v115 = vld [vmem:[%s4 + $0x8] sm:$0xf]
    %v116 = vld [vmem:[%s4 + $0xc] sm:$0xf]
    %v117 = vld [vmem:[%s4 + $0x10] sm:$0xf]
    %v118 = vld [vmem:[%s4 + $0x14] sm:$0xf]
    %v119 = vld [vmem:[%s4 + $0x18] sm:$0xf]
    %v120 = vld [vmem:[%s4 + $0x1c] sm:$0xf]
    %v121 = vld [vmem:[%s4 + $0x20] sm:$0xf]
    %v122 = vld [vmem:[%s4 + $0x24] sm:$0xf]
    %v123 = vld [vmem:[%s4 + $0x28] sm:$0xf]
    %v124 = vld [vmem:[%s4 + $0x2c] sm:$0xf]
    %v125 = vld [vmem:[%s4 + $0x30] sm:$0xf]
    %v126 = vld [vmem:[%s4 + $0x34] sm:$0xf]
    %v127 = vld [vmem:[%s4 + $0x38] sm:$0xf]
    %v128 = vld [vmem:[%s4 + $0x3c] sm:$0xf]
    %v129 = vld [vmem:[%s5] sm:$0x1]
    %v131 = vlaneseq
    %v132 = vshrl.u32 %v131, 7
    %v133 = vsub.s32 0, %v132
    %v134 = vrot.slane %v129, %v133
    %v138 = vunpack.c.l.b16 %v74
    %v139 = vunpack.c.l.b16 %v75
    %v140 = vpack.c.b16 %v139, %v138
    %v158 = vunpack.c.l.b16 %v113
    %v159 = vunpack.c.l.b16 %v114
    %v160 = vunpack.c.l.b16 %v115
    %v161 = vunpack.c.l.b16 %v116
    %v162 = vunpack.c.l.b16 %v117
    %v163 = vunpack.c.l.b16 %v118
    %v164 = vunpack.c.l.b16 %v119
    %v165 = vunpack.c.l.b16 %v120
    %v166 = vunpack.c.l.b16 %v121
    %v167 = vunpack.c.l.b16 %v122
    %v168 = vunpack.c.l.b16 %v123
    %v169 = vunpack.c.l.b16 %v124
    %v170 = vunpack.c.l.b16 %v125
    %v171 = vunpack.c.l.b16 %v126
    %v172 = vunpack.c.l.b16 %v127
    %v173 = vunpack.c.l.b16 %v128
    %v174 = vpack.c.b16 %v159, %v158
    %v175 = vpack.c.b16 %v161, %v160
    %v176 = vpack.c.b16 %v163, %v162
    %v177 = vpack.c.b16 %v165, %v164
    %v178 = vpack.c.b16 %v167, %v166
    %v179 = vpack.c.b16 %v169, %v168
    %v180 = vpack.c.b16 %v171, %v170
    %v181 = vpack.c.b16 %v173, %v172
    %190 = vmatprep.subr.bf16.mxu0 0
    %191 = vmatpush1.bf16.msra.mxu0 %v174
    %192 = vmatprep.subr.bf16.mxu0 0
    %193 = vmatpush1.bf16.msra.mxu0 %v175
    %194 = vmatprep.subr.bf16.mxu0 0
    %195 = vmatpush1.bf16.msra.mxu0 %v176
    %196 = vmatprep.subr.bf16.mxu0 0
    %197 = vmatpush1.bf16.msra.mxu0 %v177
    %198 = vmatprep.subr.bf16.mxu0 0
    %199 = vmatpush1.bf16.msra.mxu0 %v178
    %200 = vmatprep.subr.bf16.mxu0 0
    %201 = vmatpush1.bf16.msra.mxu0 %v179
    %202 = vmatprep.subr.bf16.mxu0 0
    %203 = vmatpush1.bf16.msra.mxu0 %v180
    %204 = vmatprep.subr.bf16.mxu0 0
    %205 = vmatpush1.bf16.msra.mxu0 %v181
    %206 = vmatprep.subr.bf16.mxu0 0
    %207 = vmatpush1.bf16.msra.mxu0 0
    %208 = vmatprep.subr.bf16.mxu0 0
    %209 = vmatpush1.bf16.msra.mxu0 0
    %210 = vmatprep.subr.bf16.mxu0 0
    %211 = vmatpush1.bf16.msra.mxu0 0
    %212 = vmatprep.subr.bf16.mxu0 0
    %213 = vmatpush1.bf16.msra.mxu0 0
    %214 = vmatprep.subr.bf16.mxu0 0
    %215 = vmatpush1.bf16.msra.mxu0 0
    %216 = vmatprep.subr.bf16.mxu0 0
    %217 = vmatpush1.bf16.msra.mxu0 0
    %218 = vmatprep.subr.bf16.mxu0 0
    %219 = vmatpush1.bf16.msra.mxu0 0
    %220 = vmatprep.subr.bf16.mxu0 0
    %221 = vmatpush1.bf16.msra.mxu0 0
    %222 = vmatprep.mubr.bf16.mxu0 0
    %223 = vmatmul.mubr.bf16.gmra.mrb[0].mxu0 %v140
    %v224 = vpop.f32.mrb[0].mxu0
    %v225 = vadd.f32 %v134, %v224
    %v226 = vpop.f32.mrb[0].mxu0
    %v227 = vpop.f32.mrb[0].mxu0
    %v228 = vadd.f32 %v134, %v227
    %v229 = vpop.f32.mrb[0].mxu0
    %230 = vdwg.mxu0
    %v231 = vmul.f32 %v77, %v92
    %v232 = vmul.f32 %v78, %v92
    %v233 = vpack.c.bf16 %v232, %v231
    %v234 = vpack.c.bf16 %v228, %v225
    %v235 = vld [vmem:[#allocation2] sm:$0xf]
    %v236 = vld [vmem:[#allocation2 + $0x4] sm:$0xf]
    %v237 = vld [vmem:[#allocation2 + $0x8] sm:$0xf]
    %v238 = vld [vmem:[#allocation2 + $0xc] sm:$0xf]
    %v239 = vld [vmem:[#allocation2 + $0x10] sm:$0xf]
    %v240 = vld [vmem:[#allocation2 + $0x14] sm:$0xf]
    %v241 = vld [vmem:[#allocation2 + $0x18] sm:$0xf]
    %v242 = vld [vmem:[#allocation2 + $0x1c] sm:$0xf]
    %v243 = vld [vmem:[#allocation2 + $0x20] sm:$0xf]
    %v244 = vld [vmem:[#allocation2 + $0x24] sm:$0xf]
    %v245 = vld [vmem:[#allocation2 + $0x28] sm:$0xf]
    %v246 = vld [vmem:[#allocation2 + $0x2c] sm:$0xf]
    %v247 = vld [vmem:[#allocation2 + $0x30] sm:$0xf]
    %v248 = vld [vmem:[#allocation2 + $0x34] sm:$0xf]
    %v249 = vld [vmem:[#allocation2 + $0x38] sm:$0xf]
    %v250 = vld [vmem:[#allocation2 + $0x3c] sm:$0xf]
    %v251 = vpack.c.bf16 %v76, %v76
    %v268 = vunpack.c.l.b16 %v235
    %v269 = vunpack.c.l.b16 %v236
    %v270 = vunpack.c.l.b16 %v237
    %v271 = vunpack.c.l.b16 %v238
    %v272 = vunpack.c.l.b16 %v239
    %v273 = vunpack.c.l.b16 %v240
    %v274 = vunpack.c.l.b16 %v241
    %v275 = vunpack.c.l.b16 %v242
    %v276 = vunpack.c.l.b16 %v243
    %v277 = vunpack.c.l.b16 %v244
    %v278 = vunpack.c.l.b16 %v245
    %v279 = vunpack.c.l.b16 %v246
    %v280 = vunpack.c.l.b16 %v247
    %v281 = vunpack.c.l.b16 %v248
    %v282 = vunpack.c.l.b16 %v249
    %v283 = vunpack.c.l.b16 %v250
    %v284 = vpack.c.b16 %v269, %v268
    %v285 = vpack.c.b16 %v271, %v270
    %v286 = vpack.c.b16 %v273, %v272
    %v287 = vpack.c.b16 %v275, %v274
    %v288 = vpack.c.b16 %v277, %v276
    %v289 = vpack.c.b16 %v279, %v278
    %v290 = vpack.c.b16 %v281, %v280
    %v291 = vpack.c.b16 %v283, %v282
    %300 = vmatprep.subr.bf16.mxu0 0
    %301 = vmatpush1.bf16.msra.mxu0 %v284
    %302 = vmatprep.subr.bf16.mxu0 0
    %303 = vmatpush1.bf16.msra.mxu0 %v285
    %304 = vmatprep.subr.bf16.mxu0 0
    %305 = vmatpush1.bf16.msra.mxu0 %v286
    %306 = vmatprep.subr.bf16.mxu0 0
    %307 = vmatpush1.bf16.msra.mxu0 %v287
    %308 = vmatprep.subr.bf16.mxu0 0
    %309 = vmatpush1.bf16.msra.mxu0 %v288
    %310 = vmatprep.subr.bf16.mxu0 0
    %311 = vmatpush1.bf16.msra.mxu0 %v289
    %312 = vmatprep.subr.bf16.mxu0 0
    %313 = vmatpush1.bf16.msra.mxu0 %v290
    %314 = vmatprep.subr.bf16.mxu0 0
    %315 = vmatpush1.bf16.msra.mxu0 %v291
    %316 = vmatprep.subr.bf16.mxu0 0
    %317 = vmatpush1.bf16.msra.mxu0 0
    %318 = vmatprep.subr.bf16.mxu0 0
    %319 = vmatpush1.bf16.msra.mxu0 0
    %320 = vmatprep.subr.bf16.mxu0 0
    %321 = vmatpush1.bf16.msra.mxu0 0
    %322 = vmatprep.subr.bf16.mxu0 0
    %323 = vmatpush1.bf16.msra.mxu0 0
    %324 = vmatprep.subr.bf16.mxu0 0
    %325 = vmatpush1.bf16.msra.mxu0 0
    %326 = vmatprep.subr.bf16.mxu0 0
    %327 = vmatpush1.bf16.msra.mxu0 0
    %328 = vmatprep.subr.bf16.mxu0 0
    %329 = vmatpush1.bf16.msra.mxu0 0
    %330 = vmatprep.subr.bf16.mxu0 0
    %331 = vmatpush1.bf16.msra.mxu0 0
    %332 = vmatprep.mubr.bf16.mxu0 0
    %333 = vmatmul.mubr.bf16.gmra.mrb[0].mxu0 %v251
    %v334 = vpop.f32.mrb[0].mxu0
    %v335 = vadd.f32 0.0, %v334
    %v336 = vpop.f32.mrb[0].mxu0
    %v337 = vpop.f32.mrb[0].mxu0
    %v338 = vpop.f32.mrb[0].mxu0
    %339 = vdwg.mxu0
    %340 = vxpose.xlu0.c.b16.start [1/8] %v233, 128
    %341 = vxpose.xlu0.c.b16.cont [2/8] 0, 128
    %342 = vxpose.xlu0.c.b16.cont [3/8] 0, 128
    %343 = vxpose.xlu0.c.b16.cont [4/8] 0, 128
    %344 = vxpose.xlu0.c.b16.cont [5/8] 0, 128
    %345 = vxpose.xlu0.c.b16.cont [6/8] 0, 128
    %346 = vxpose.xlu0.c.b16.cont [7/8] 0, 128
    %347 = vxpose.xlu0.c.b16.end [8/8] 0, 128
    %v348 = vpop.trf.xlu0
    %v349 = vpop.trf.xlu0
    %v350 = vpop.trf.xlu0
    %v351 = vpop.trf.xlu0
    %v352 = vpop.trf.xlu0
    %v353 = vpop.trf.xlu0
    %v354 = vpop.trf.xlu0
    %v355 = vpop.trf.xlu0
    %vm356 = vcmask 130048
    %v358 = vsel %vm356, %v348, 0
    %360 = vmatprep.subr.bf16.mxu0 0
    %361 = vmatpush1.bf16.msra.mxu0 %v234
    %362 = vmatprep.subr.bf16.mxu0 0
    %363 = vmatpush1.bf16.msra.mxu0 0
    %364 = vmatprep.subr.bf16.mxu0 0
    %365 = vmatpush1.bf16.msra.mxu0 0
    %366 = vmatprep.subr.bf16.mxu0 0
    %367 = vmatpush1.bf16.msra.mxu0 0
    %368 = vmatprep.subr.bf16.mxu0 0
    %369 = vmatpush1.bf16.msra.mxu0 0
    %370 = vmatprep.subr.bf16.mxu0 0
    %371 = vmatpush1.bf16.msra.mxu0 0
    %372 = vmatprep.subr.bf16.mxu0 0
    %373 = vmatpush1.bf16.msra.mxu0 0
    %374 = vmatprep.subr.bf16.mxu0 0
    %375 = vmatpush1.bf16.msra.mxu0 0
    %376 = vmatprep.subr.bf16.mxu0 0
    %377 = vmatpush1.bf16.msra.mxu0 0
    %378 = vmatprep.subr.bf16.mxu0 0
    %379 = vmatpush1.bf16.msra.mxu0 0
    %380 = vmatprep.subr.bf16.mxu0 0
    %381 = vmatpush1.bf16.msra.mxu0 0
    %382 = vmatprep.subr.bf16.mxu0 0
    %383 = vmatpush1.bf16.msra.mxu0 0
    %384 = vmatprep.subr.bf16.mxu0 0
    %385 = vmatpush1.bf16.msra.mxu0 0
    %386 = vmatprep.subr.bf16.mxu0 0
    %387 = vmatpush1.bf16.msra.mxu0 0
    %388 = vmatprep.subr.bf16.mxu0 0
    %389 = vmatpush1.bf16.msra.mxu0 0
    %390 = vmatprep.subr.bf16.mxu0 0
    %391 = vmatpush1.bf16.msra.mxu0 0
    %392 = vmatprep.mubr.bf16.mxu0 0
    %393 = vmatmul.mubr.bf16.gmra.mrb[0].mxu0 %v358
    %v394 = vpop.f32.mrb[0].mxu0
    %v395 = vadd.f32 %v335, %v394
    %v396 = vpop.f32.mrb[0].mxu0
    %v397 = vpop.f32.mrb[0].mxu0
    %v398 = vpop.f32.mrb[0].mxu0
    %399 = vdwg.mxu0
    %v400 = vld [vmem:[%s7] sm:$0x1]
    %v402 = vlaneseq
    %v403 = vshrl.u32 %v402, 7
    %v404 = vsub.s32 0, %v403
    %v405 = vrot.slane %v400, %v404
    %v407 = vadd.f32 %v395, %v405
    %v408 = vadd.f32 %v407, %v76
    %409 = vst [vmem:[#allocation8] sm:$0xff] %v408
    %v410 = vld [vmem:[#allocation5] sm:$0xff]
    %v411 = vld [vmem:[#allocation5 + $0x8] sm:$0xff]
    %v412 = vld [vmem:[#allocation5 + $0x10] sm:$0xff]
    %v413 = vld [vmem:[#allocation5 + $0x18] sm:$0xff]
    %v414 = vld [vmem:[#allocation5 + $0x20] sm:$0xff]
    %v415 = vld [vmem:[#allocation5 + $0x28] sm:$0xff]
    %v416 = vld [vmem:[#allocation5 + $0x30] sm:$0xff]
    %v417 = vld [vmem:[#allocation5 + $0x38] sm:$0xff]
    %v418 = vld [vmem:[#allocation5 + $0x40] sm:$0xff]
    %v419 = vld [vmem:[#allocation5 + $0x48] sm:$0xff]
    %v420 = vld [vmem:[#allocation5 + $0x50] sm:$0xff]
    %v421 = vld [vmem:[#allocation5 + $0x58] sm:$0xff]
    %v422 = vld [vmem:[#allocation5 + $0x60] sm:$0xff]
    %v423 = vld [vmem:[#allocation5 + $0x68] sm:$0xff]
    %v424 = vld [vmem:[#allocation5 + $0x70] sm:$0xff]
    %v425 = vld [vmem:[#allocation5 + $0x78] sm:$0xff]
    %v426 = vld [vmem:[#allocation5 + $0x80] sm:$0xff]
    %v427 = vld [vmem:[#allocation5 + $0x88] sm:$0xff]
    %v428 = vld [vmem:[#allocation5 + $0x90] sm:$0xff]
    %v429 = vld [vmem:[#allocation5 + $0x98] sm:$0xff]
    %v430 = vld [vmem:[#allocation5 + $0xa0] sm:$0xff]
    %v431 = vld [vmem:[#allocation5 + $0xa8] sm:$0xff]
    %v432 = vld [vmem:[#allocation5 + $0xb0] sm:$0xff]
    %v433 = vld [vmem:[#allocation5 + $0xb8] sm:$0xff]
    %v434 = vld [vmem:[#allocation5 + $0xc0] sm:$0xff]
    %v435 = vld [vmem:[#allocation5 + $0xc8] sm:$0xff]
    %v436 = vld [vmem:[#allocation5 + $0xd0] sm:$0xff]
    %v437 = vld [vmem:[#allocation5 + $0xd8] sm:$0xff]
    %v438 = vld [vmem:[#allocation5 + $0xe0] sm:$0xff]
    %v439 = vld [vmem:[#allocation5 + $0xe8] sm:$0xff]
    %v440 = vld [vmem:[#allocation5 + $0xf0] sm:$0xff]
    %v441 = vld [vmem:[#allocation5 + $0xf8] sm:$0xff]
    %v474 = vunpack.c.l.b16 %v410
    %v475 = vunpack.c.h.b16 %v410
    %v476 = vunpack.c.l.b16 %v411
    %v477 = vunpack.c.h.b16 %v411
    %v478 = vunpack.c.l.b16 %v412
    %v479 = vunpack.c.h.b16 %v412
    %v480 = vunpack.c.l.b16 %v413
    %v481 = vunpack.c.h.b16 %v413
    %v482 = vunpack.c.l.b16 %v414
    %v483 = vunpack.c.h.b16 %v414
    %v484 = vunpack.c.l.b16 %v415
    %v485 = vunpack.c.h.b16 %v415
    %v486 = vunpack.c.l.b16 %v416
    %v487 = vunpack.c.h.b16 %v416
    %v488 = vunpack.c.l.b16 %v417
    %v489 = vunpack.c.h.b16 %v417
    %v490 = vunpack.c.l.b16 %v418
    %v491 = vunpack.c.h.b16 %v418
    %v492 = vunpack.c.l.b16 %v419
    %v493 = vunpack.c.h.b16 %v419
    %v494 = vunpack.c.l.b16 %v420
    %v495 = vunpack.c.h.b16 %v420
    %v496 = vunpack.c.l.b16 %v421
    %v497 = vunpack.c.h.b16 %v421
    %v498 = vunpack.c.l.b16 %v422
    %v499 = vunpack.c.h.b16 %v422
    %v500 = vunpack.c.l.b16 %v423
    %v501 = vunpack.c.h.b16 %v423
    %v502 = vunpack.c.l.b16 %v424
    %v503 = vunpack.c.h.b16 %v424
    %v504 = vunpack.c.l.b16 %v425
    %v505 = vunpack.c.h.b16 %v425
    %v506 = vunpack.c.l.b16 %v426
    %v507 = vunpack.c.h.b16 %v426
    %v508 = vunpack.c.l.b16 %v427
    %v509 = vunpack.c.h.b16 %v427
    %v510 = vunpack.c.l.b16 %v428
    %v511 = vunpack.c.h.b16 %v428
    %v512 = vunpack.c.l.b16 %v429
    %v513 = vunpack.c.h.b16 %v429
    %v514 = vunpack.c.l.b16 %v430
    %v515 = vunpack.c.h.b16 %v430
    %v516 = vunpack.c.l.b16 %v431
    %v517 = vunpack.c.h.b16 %v431
    %v518 = vunpack.c.l.b16 %v432
    %v519 = vunpack.c.h.b16 %v432
    %v520 = vunpack.c.l.b16 %v433
    %v521 = vunpack.c.h.b16 %v433
    %v522 = vunpack.c.l.b16 %v434
    %v523 = vunpack.c.h.b16 %v434
    %v524 = vunpack.c.l.b16 %v435
    %v525 = vunpack.c.h.b16 %v435
    %v526 = vunpack.c.l.b16 %v436
    %v527 = vunpack.c.h.b16 %v436
    %v528 = vunpack.c.l.b16 %v437
    %v529 = vunpack.c.h.b16 %v437
    %v530 = vunpack.c.l.b16 %v438
    %v531 = vunpack.c.h.b16 %v438
    %v532 = vunpack.c.l.b16 %v439
    %v533 = vunpack.c.h.b16 %v439
    %v534 = vunpack.c.l.b16 %v440
    %v535 = vunpack.c.h.b16 %v440
    %v536 = vunpack.c.l.b16 %v441
    %v537 = vunpack.c.h.b16 %v441
    %v538 = vpack.c.b16 %v478, %v474
    %v539 = vpack.c.b16 %v479, %v475
    %v540 = vpack.c.b16 %v480, %v476
    %v541 = vpack.c.b16 %v481, %v477
    %v542 = vpack.c.b16 %v486, %v482
    %v543 = vpack.c.b16 %v487, %v483
    %v544 = vpack.c.b16 %v488, %v484
    %v545 = vpack.c.b16 %v489, %v485
    %v546 = vpack.c.b16 %v494, %v490
    %v547 = vpack.c.b16 %v495, %v491
    %v548 = vpack.c.b16 %v496, %v492
    %v549 = vpack.c.b16 %v497, %v493
    %v550 = vpack.c.b16 %v502, %v498
    %v551 = vpack.c.b16 %v503, %v499
    %v552 = vpack.c.b16 %v504, %v500
    %v553 = vpack.c.b16 %v505, %v501
    %v554 = vpack.c.b16 %v510, %v506
    %v555 = vpack.c.b16 %v511, %v507
    %v556 = vpack.c.b16 %v512, %v508
    %v557 = vpack.c.b16 %v513, %v509
    %v558 = vpack.c.b16 %v518, %v514
    %v559 = vpack.c.b16 %v519, %v515
    %v560 = vpack.c.b16 %v520, %v516
    %v561 = vpack.c.b16 %v521, %v517
    %v562 = vpack.c.b16 %v526, %v522
    %v563 = vpack.c.b16 %v527, %v523
    %v564 = vpack.c.b16 %v528, %v524
    %v565 = vpack.c.b16 %v529, %v525
    %v566 = vpack.c.b16 %v534, %v530
    %v567 = vpack.c.b16 %v535, %v531
    %v568 = vpack.c.b16 %v536, %v532
    %v569 = vpack.c.b16 %v537, %v533
    %602 = vmatprep.subr.bf16.mxu0 %v539
    %603 = vmatpush1.bf16.msra.mxu0 %v538
    %604 = vmatprep.subr.bf16.mxu0 %v543
    %605 = vmatpush1.bf16.msra.mxu0 %v542
    %606 = vmatprep.subr.bf16.mxu0 %v547
    %607 = vmatpush1.bf16.msra.mxu0 %v546
    %608 = vmatprep.subr.bf16.mxu0 %v551
    %609 = vmatpush1.bf16.msra.mxu0 %v550
    %610 = vmatprep.subr.bf16.mxu0 %v555
    %611 = vmatpush1.bf16.msra.mxu0 %v554
    %612 = vmatprep.subr.bf16.mxu0 %v559
    %613 = vmatpush1.bf16.msra.mxu0 %v558
    %614 = vmatprep.subr.bf16.mxu0 %v563
    %615 = vmatpush1.bf16.msra.mxu0 %v562
    %616 = vmatprep.subr.bf16.mxu0 %v567
    %617 = vmatpush1.bf16.msra.mxu0 %v566
    %618 = vmatprep.subr.bf16.mxu0 0
    %619 = vmatpush1.bf16.msra.mxu0 0
    %620 = vmatprep.subr.bf16.mxu0 0
    %621 = vmatpush1.bf16.msra.mxu0 0
    %622 = vmatprep.subr.bf16.mxu0 0
    %623 = vmatpush1.bf16.msra.mxu0 0
    %624 = vmatprep.subr.bf16.mxu0 0
    %625 = vmatpush1.bf16.msra.mxu0 0
    %626 = vmatprep.subr.bf16.mxu0 0
    %627 = vmatpush1.bf16.msra.mxu0 0
    %628 = vmatprep.subr.bf16.mxu0 0
    %629 = vmatpush1.bf16.msra.mxu0 0
    %630 = vmatprep.subr.bf16.mxu0 0
    %631 = vmatpush1.bf16.msra.mxu0 0
    %632 = vmatprep.subr.bf16.mxu0 0
    %633 = vmatpush1.bf16.msra.mxu0 0
    %634 = vmatprep.mubr.bf16.mxu0 0
    %635 = vmatmul.mubr.bf16.gmra.mrb[0].mxu0 %v140
    %v636 = vpop.f32.mrb[0].mxu0
    %v637 = vadd.f32 0.0, %v636
    %v638 = vpop.f32.mrb[0].mxu0
    %v639 = vadd.f32 0.0, %v638
    %v640 = vpop.f32.mrb[0].mxu0
    %v641 = vadd.f32 0.0, %v640
    %v642 = vpop.f32.mrb[0].mxu0
    %v643 = vadd.f32 0.0, %v642
    %644 = vdwg.mxu0
    %645 = vmatprep.subr.bf16.mxu0 %v541
    %646 = vmatpush1.bf16.msra.mxu0 %v540
    %647 = vmatprep.subr.bf16.mxu0 %v545
    %648 = vmatpush1.bf16.msra.mxu0 %v544
    %649 = vmatprep.subr.bf16.mxu0 %v549
    %650 = vmatpush1.bf16.msra.mxu0 %v548
    %651 = vmatprep.subr.bf16.mxu0 %v553
    %652 = vmatpush1.bf16.msra.mxu0 %v552
    %653 = vmatprep.subr.bf16.mxu0 %v557
    %654 = vmatpush1.bf16.msra.mxu0 %v556
    %655 = vmatprep.subr.bf16.mxu0 %v561
    %656 = vmatpush1.bf16.msra.mxu0 %v560
    %657 = vmatprep.subr.bf16.mxu0 %v565
    %658 = vmatpush1.bf16.msra.mxu0 %v564
    %659 = vmatprep.subr.bf16.mxu0 %v569
    %660 = vmatpush1.bf16.msra.mxu0 %v568
    %661 = vmatprep.subr.bf16.mxu0 0
    %662 = vmatpush1.bf16.msra.mxu0 0
    %663 = vmatprep.subr.bf16.mxu0 0
    %664 = vmatpush1.bf16.msra.mxu0 0
    %665 = vmatprep.subr.bf16.mxu0 0
    %666 = vmatpush1.bf16.msra.mxu0 0
    %667 = vmatprep.subr.bf16.mxu0 0
    %668 = vmatpush1.bf16.msra.mxu0 0
    %669 = vmatprep.subr.bf16.mxu0 0
    %670 = vmatpush1.bf16.msra.mxu0 0
    %671 = vmatprep.subr.bf16.mxu0 0
    %672 = vmatpush1.bf16.msra.mxu0 0
    %673 = vmatprep.subr.bf16.mxu0 0
    %674 = vmatpush1.bf16.msra.mxu0 0
    %675 = vmatprep.subr.bf16.mxu0 0
    %676 = vmatpush1.bf16.msra.mxu0 0
    %677 = vmatprep.mubr.bf16.mxu0 0
    %678 = vmatmul.mubr.bf16.gmra.mrb[0].mxu0 %v140
    %v679 = vpop.f32.mrb[0].mxu0
    %v680 = vadd.f32 0.0, %v679
    %v681 = vpop.f32.mrb[0].mxu0
    %v682 = vadd.f32 0.0, %v681
    %v683 = vpop.f32.mrb[0].mxu0
    %v684 = vadd.f32 0.0, %v683
    %v685 = vpop.f32.mrb[0].mxu0
    %v686 = vadd.f32 0.0, %v685
    %687 = vdwg.mxu0
    %v688 = vld [vmem:[%s9] sm:$0xf]
    %v689 = vld [vmem:[%s9 + $0x4] sm:$0xf]
    %v690 = vld [vmem:[%s9 + $0x8] sm:$0xf]
    %v691 = vld [vmem:[%s9 + $0xc] sm:$0xf]
    %v692 = vld [vmem:[%s9 + $0x10] sm:$0xf]
    %v693 = vld [vmem:[%s9 + $0x14] sm:$0xf]
    %v694 = vld [vmem:[%s9 + $0x18] sm:$0xf]
    %v695 = vld [vmem:[%s9 + $0x1c] sm:$0xf]
    %v696 = vld [vmem:[%s9 + $0x20] sm:$0xf]
    %v697 = vld [vmem:[%s9 + $0x24] sm:$0xf]
    %v698 = vld [vmem:[%s9 + $0x28] sm:$0xf]
    %v699 = vld [vmem:[%s9 + $0x2c] sm:$0xf]
    %v700 = vld [vmem:[%s9 + $0x30] sm:$0xf]
    %v701 = vld [vmem:[%s9 + $0x34] sm:$0xf]
    %v702 = vld [vmem:[%s9 + $0x38] sm:$0xf]
    %v703 = vld [vmem:[%s9 + $0x3c] sm:$0xf]
    %v720 = vunpack.c.l.b16 %v688
    %v721 = vunpack.c.l.b16 %v689
    %v722 = vunpack.c.l.b16 %v690
    %v723 = vunpack.c.l.b16 %v691
    %v724 = vunpack.c.l.b16 %v692
    %v725 = vunpack.c.l.b16 %v693
    %v726 = vunpack.c.l.b16 %v694
    %v727 = vunpack.c.l.b16 %v695
    %v728 = vunpack.c.l.b16 %v696
    %v729 = vunpack.c.l.b16 %v697
    %v730 = vunpack.c.l.b16 %v698
    %v731 = vunpack.c.l.b16 %v699
    %v732 = vunpack.c.l.b16 %v700
    %v733 = vunpack.c.l.b16 %v701
    %v734 = vunpack.c.l.b16 %v702
    %v735 = vunpack.c.l.b16 %v703
    %v736 = vpack.c.b16 %v721, %v720
    %v737 = vpack.c.b16 %v723, %v722
    %v738 = vpack.c.b16 %v725, %v724
    %v739 = vpack.c.b16 %v727, %v726
    %v740 = vpack.c.b16 %v729, %v728
    %v741 = vpack.c.b16 %v731, %v730
    %v742 = vpack.c.b16 %v733, %v732
    %v743 = vpack.c.b16 %v735, %v734
    %752 = vmatprep.subr.bf16.mxu0 0
    %753 = vmatpush1.bf16.msra.mxu0 %v736
    %754 = vmatprep.subr.bf16.mxu0 0
    %755 = vmatpush1.bf16.msra.mxu0 %v737
    %756 = vmatprep.subr.bf16.mxu0 0
    %757 = vmatpush1.bf16.msra.mxu0 %v738
    %758 = vmatprep.subr.bf16.mxu0 0
    %759 = vmatpush1.bf16.msra.mxu0 %v739
    %760 = vmatprep.subr.bf16.mxu0 0
    %761 = vmatpush1.bf16.msra.mxu0 %v740
    %762 = vmatprep.subr.bf16.mxu0 0
    %763 = vmatpush1.bf16.msra.mxu0 %v741
    %764 = vmatprep.subr.bf16.mxu0 0
    %765 = vmatpush1.bf16.msra.mxu0 %v742
    %766 = vmatprep.subr.bf16.mxu0 0
    %767 = vmatpush1.bf16.msra.mxu0 %v743
    %768 = vmatprep.subr.bf16.mxu0 0
    %769 = vmatpush1.bf16.msra.mxu0 0
    %770 = vmatprep.subr.bf16.mxu0 0
    %771 = vmatpush1.bf16.msra.mxu0 0
    %772 = vmatprep.subr.bf16.mxu0 0
    %773 = vmatpush1.bf16.msra.mxu0 0
    %774 = vmatprep.subr.bf16.mxu0 0
    %775 = vmatpush1.bf16.msra.mxu0 0
    %776 = vmatprep.subr.bf16.mxu0 0
    %777 = vmatpush1.bf16.msra.mxu0 0
    %778 = vmatprep.subr.bf16.mxu0 0
    %779 = vmatpush1.bf16.msra.mxu0 0
    %780 = vmatprep.subr.bf16.mxu0 0
    %781 = vmatpush1.bf16.msra.mxu0 0
    %782 = vmatprep.subr.bf16.mxu0 0
    %783 = vmatpush1.bf16.msra.mxu0 0
    %784 = vmatprep.mubr.bf16.mxu0 0
    %785 = vmatmul.mubr.bf16.gmra.mrb[0].mxu0 %v140
    %v786 = vpop.f32.mrb[0].mxu0
    %v787 = vadd.f32 0.0, %v786
    %v788 = vpop.f32.mrb[0].mxu0
    %v789 = vpop.f32.mrb[0].mxu0
    %v790 = vadd.f32 0.0, %v789
    %v791 = vpop.f32.mrb[0].mxu0
    %792 = vdwg.mxu0
    %v793 = vld [vmem:[%s10] sm:$0x3]
    %v794 = vpack.c.bf16 %v408, %v408
    %795 = vmatprep.subr.bf16.mxu0 0
    %796 = vmatpush1.bf16.xpose.msra.mxu0 %v794
    %797 = vmatprep.subr.bf16.mxu0 0
    %798 = vmatpush1.bf16.xpose.msra.mxu0 0
    %799 = vmatprep.subr.bf16.mxu0 0
    %800 = vmatpush1.bf16.xpose.msra.mxu0 0
    %801 = vmatprep.subr.bf16.mxu0 0
    %802 = vmatpush1.bf16.xpose.msra.mxu0 0
    %803 = vmatprep.subr.bf16.mxu0 0
    %804 = vmatpush1.bf16.xpose.msra.mxu0 0
    %805 = vmatprep.subr.bf16.mxu0 0
    %806 = vmatpush1.bf16.xpose.msra.mxu0 0
    %807 = vmatprep.subr.bf16.mxu0 0
    %808 = vmatpush1.bf16.xpose.msra.mxu0 0
    %809 = vmatprep.subr.bf16.mxu0 0
    %810 = vmatpush1.bf16.xpose.msra.mxu0 0
    %811 = vmatprep.subr.bf16.mxu0 0
    %812 = vmatpush1.bf16.xpose.msra.mxu0 0
    %813 = vmatprep.subr.bf16.mxu0 0
    %814 = vmatpush1.bf16.xpose.msra.mxu0 0
    %815 = vmatprep.subr.bf16.mxu0 0
    %816 = vmatpush1.bf16.xpose.msra.mxu0 0
    %817 = vmatprep.subr.bf16.mxu0 0
    %818 = vmatpush1.bf16.xpose.msra.mxu0 0
    %819 = vmatprep.subr.bf16.mxu0 0
    %820 = vmatpush1.bf16.xpose.msra.mxu0 0
    %821 = vmatprep.subr.bf16.mxu0 0
    %822 = vmatpush1.bf16.xpose.msra.mxu0 0
    %823 = vmatprep.subr.bf16.mxu0 0
    %824 = vmatpush1.bf16.xpose.msra.mxu0 0
    %825 = vmatprep.subr.bf16.mxu0 0
    %826 = vmatpush1.bf16.xpose.msra.mxu0 0
    %827 = vmatprep.mubr.bf16.mxu0 0
    %828 = vmatmul.mubr.bf16.gmra.mrb[0].mxu0 %v793
    %v829 = vpop.f32.mrb[0].mxu0
    %v830 = vadd.f32 0.0, %v829
    %v831 = vpop.f32.mrb[0].mxu0
    %v832 = vpop.f32.mrb[0].mxu0
    %v833 = vpop.f32.mrb[0].mxu0
    %834 = vdwg.mxu0
    %vm835 = vcmp.gt.f32.partialorder %v77, 0.0
    %vm836 = vcmp.gt.f32.partialorder %v78, 0.0
    %838 = vset.pattern.permute.xlu0 0
    %839 = vperm.xlu0 %838, %v787
    %v840 = vpop.permute.xlu0 %839
    %843 = vset.pattern.permute.xlu0 0
    %844 = vperm.xlu0 %843, %v790
    %v845 = vpop.permute.xlu0 %844
    %v847 = vlaneseq
    %v848 = vshrl.u32 %v847, 7
    %v849 = vsub.s32 0, %v848
    %v850 = vrot.slane %v830, %v849
    %v851 = vadd.f32 %v840, %v850
    %v852 = vadd.f32 %v845, %v850
    %vm853 = vcmp.gt.f32.partialorder %v851, 0.0
    %vm854 = vcmp.gt.f32.partialorder %v852, 0.0
    %v855 = vmul.f32 %v851, 0.2
    %v856 = vmul.f32 %v852, 0.2
    %v857 = vsel %vm853, %v851, %v855
    %v858 = vsel %vm854, %v852, %v856
    %v859 = vsel %vm835, %v857, -1e+30
    %v860 = vsel %vm836, %v858, -1e+30
    %v861 = vsel %vm80, %v859, -inf
    %v862 = vsel %vm80, %v860, -inf
    %v863 = vmax.f32 %v861, %v862
    %v864 = vrot.slane %v863, 4
    %v865 = vmax.f32 %v863, %v864
    %v866 = vrot.slane %v865, 2
    %v867 = vmax.f32 %v865, %v866
    %v868 = vrot.slane %v867, 1
    %v869 = vmax.f32 %v867, %v868
    %v870 = vsub.f32 %v859, %v869
    %v871 = vsub.f32 %v860, %v869
    %v872 = vmul.f32 %v870, 1.442695
    %v873 = vpow.pop %v872
    %v874 = vmul.f32 %v871, 1.442695
    %v875 = vpow.pop %v874
    %v876 = vsel %vm80, %v873, 0.0
    %v877 = vsel %vm80, %v875, 0.0
    %v878 = vadd.f32 %v876, %v877
    %v879 = vrot.slane %v878, 4
    %v880 = vadd.f32 %v878, %v879
    %v881 = vrot.slane %v880, 2
    %v882 = vadd.f32 %v880, %v881
    %v883 = vrot.slane %v882, 1
    %v884 = vadd.f32 %v882, %v883
    %v885 = vadd.f32 %v884, 1e-16
    %v886 = vrcp.pop %v885
    %v887 = vmul.f32 %v873, %v886
    %v888 = vmul.f32 %v875, %v886
    %v889 = vmul.f32 %v887, %v92
    %v890 = vmul.f32 %v888, %v92
    %v891 = vpack.c.bf16 %v890, %v889
    %v892 = vpack.c.bf16 %v641, %v637
    %893 = vxpose.xlu0.c.b16.start [1/8] %v891, 128
    %894 = vxpose.xlu0.c.b16.cont [2/8] 0, 128
    %895 = vxpose.xlu0.c.b16.cont [3/8] 0, 128
    %896 = vxpose.xlu0.c.b16.cont [4/8] 0, 128
    %897 = vxpose.xlu0.c.b16.cont [5/8] 0, 128
    %898 = vxpose.xlu0.c.b16.cont [6/8] 0, 128
    %899 = vxpose.xlu0.c.b16.cont [7/8] 0, 128
    %900 = vxpose.xlu0.c.b16.end [8/8] 0, 128
    %v901 = vpop.trf.xlu0
    %v902 = vpop.trf.xlu0
    %v903 = vpop.trf.xlu0
    %v904 = vpop.trf.xlu0
    %v905 = vpop.trf.xlu0
    %v906 = vpop.trf.xlu0
    %v907 = vpop.trf.xlu0
    %v908 = vpop.trf.xlu0
    %v910 = vsel %vm356, %v901, 0
    %912 = vmatprep.subr.bf16.mxu0 0
    %913 = vmatpush1.bf16.msra.mxu0 %v892
    %914 = vmatprep.subr.bf16.mxu0 0
    %915 = vmatpush1.bf16.msra.mxu0 0
    %916 = vmatprep.subr.bf16.mxu0 0
    %917 = vmatpush1.bf16.msra.mxu0 0
    %918 = vmatprep.subr.bf16.mxu0 0
    %919 = vmatpush1.bf16.msra.mxu0 0
    %920 = vmatprep.subr.bf16.mxu0 0
    %921 = vmatpush1.bf16.msra.mxu0 0
    %922 = vmatprep.subr.bf16.mxu0 0
    %923 = vmatpush1.bf16.msra.mxu0 0
    %924 = vmatprep.subr.bf16.mxu0 0
    %925 = vmatpush1.bf16.msra.mxu0 0
    %926 = vmatprep.subr.bf16.mxu0 0
    %927 = vmatpush1.bf16.msra.mxu0 0
    %928 = vmatprep.subr.bf16.mxu0 0
    %929 = vmatpush1.bf16.msra.mxu0 0
    %930 = vmatprep.subr.bf16.mxu0 0
    %931 = vmatpush1.bf16.msra.mxu0 0
    %932 = vmatprep.subr.bf16.mxu0 0
    %933 = vmatpush1.bf16.msra.mxu0 0
    %934 = vmatprep.subr.bf16.mxu0 0
    %935 = vmatpush1.bf16.msra.mxu0 0
    %936 = vmatprep.subr.bf16.mxu0 0
    %937 = vmatpush1.bf16.msra.mxu0 0
    %938 = vmatprep.subr.bf16.mxu0 0
    %939 = vmatpush1.bf16.msra.mxu0 0
    %940 = vmatprep.subr.bf16.mxu0 0
    %941 = vmatpush1.bf16.msra.mxu0 0
    %942 = vmatprep.subr.bf16.mxu0 0
    %943 = vmatpush1.bf16.msra.mxu0 0
    %944 = vmatprep.mubr.bf16.mxu0 0
    %945 = vmatmul.mubr.bf16.gmra.mrb[0].mxu0 %v910
    %v946 = vpop.f32.mrb[0].mxu0
    %v947 = vadd.f32 0.0, %v946
    %v948 = vpop.f32.mrb[0].mxu0
    %v949 = vpop.f32.mrb[0].mxu0
    %v950 = vpop.f32.mrb[0].mxu0
    %951 = vdwg.mxu0
    %v952 = vpack.c.bf16 %v888, %v887
    %v953 = vpack.c.bf16 %v947, %v947
    %954 = vset.pattern.permute.xlu0 1
    %955 = vperm.xlu0 %954, %v787
    %v956 = vpop.permute.xlu0 %955
    %958 = vset.pattern.permute.xlu0 1
    %959 = vperm.xlu0 %958, %v790
    %v960 = vpop.permute.xlu0 %959
    %v962 = vlaneseq
    %v963 = vshrl.u32 %v962, 7
    %v964 = vsub.s32 1, %v963
    %v965 = vrot.slane %v830, %v964
    %v966 = vadd.f32 %v956, %v965
    %v967 = vadd.f32 %v960, %v965
    %vm968 = vcmp.gt.f32.partialorder %v966, 0.0
    %vm969 = vcmp.gt.f32.partialorder %v967, 0.0
    %v970 = vmul.f32 %v966, 0.2
    %v971 = vmul.f32 %v967, 0.2
    %v972 = vsel %vm968, %v966, %v970
    %v973 = vsel %vm969, %v967, %v971
    %v974 = vsel %vm835, %v972, -1e+30
    %v975 = vsel %vm836, %v973, -1e+30
    %v976 = vsel %vm80, %v974, -inf
    %v977 = vsel %vm80, %v975, -inf
    %v978 = vmax.f32 %v976, %v977
    %v979 = vrot.slane %v978, 4
    %v980 = vmax.f32 %v978, %v979
    %v981 = vrot.slane %v980, 2
    %v982 = vmax.f32 %v980, %v981
    %v983 = vrot.slane %v982, 1
    %v984 = vmax.f32 %v982, %v983
    %v985 = vsub.f32 %v974, %v984
    %v986 = vsub.f32 %v975, %v984
    %v987 = vmul.f32 %v985, 1.442695
    %v988 = vpow.pop %v987
    %v989 = vmul.f32 %v986, 1.442695
    %v990 = vpow.pop %v989
    %v991 = vsel %vm80, %v988, 0.0
    %v992 = vsel %vm80, %v990, 0.0
    %v993 = vadd.f32 %v991, %v992
    %v994 = vrot.slane %v993, 4
    %v995 = vadd.f32 %v993, %v994
    %v996 = vrot.slane %v995, 2
    %v997 = vadd.f32 %v995, %v996
    %v998 = vrot.slane %v997, 1
    %v999 = vadd.f32 %v997, %v998
    %v1000 = vadd.f32 %v999, 1e-16
    %v1001 = vrcp.pop %v1000
    %v1002 = vmul.f32 %v988, %v1001
    %v1003 = vmul.f32 %v990, %v1001
    %v1004 = vmul.f32 %v1002, %v92
    %v1005 = vmul.f32 %v1003, %v92
    %v1006 = vpack.c.bf16 %v1005, %v1004
    %v1007 = vpack.c.bf16 %v643, %v639
    %1008 = vxpose.xlu0.c.b16.start [1/8] %v1006, 128
    %1009 = vxpose.xlu0.c.b16.cont [2/8] 0, 128
    %1010 = vxpose.xlu0.c.b16.cont [3/8] 0, 128
    %1011 = vxpose.xlu0.c.b16.cont [4/8] 0, 128
    %1012 = vxpose.xlu0.c.b16.cont [5/8] 0, 128
    %1013 = vxpose.xlu0.c.b16.cont [6/8] 0, 128
    %1014 = vxpose.xlu0.c.b16.cont [7/8] 0, 128
    %1015 = vxpose.xlu0.c.b16.end [8/8] 0, 128
    %v1016 = vpop.trf.xlu0
    %v1017 = vpop.trf.xlu0
    %v1018 = vpop.trf.xlu0
    %v1019 = vpop.trf.xlu0
    %v1020 = vpop.trf.xlu0
    %v1021 = vpop.trf.xlu0
    %v1022 = vpop.trf.xlu0
    %v1023 = vpop.trf.xlu0
    %v1025 = vsel %vm356, %v1016, 0
    %1027 = vmatprep.subr.bf16.mxu0 0
    %1028 = vmatpush1.bf16.msra.mxu0 %v1007
    %1029 = vmatprep.subr.bf16.mxu0 0
    %1030 = vmatpush1.bf16.msra.mxu0 0
    %1031 = vmatprep.subr.bf16.mxu0 0
    %1032 = vmatpush1.bf16.msra.mxu0 0
    %1033 = vmatprep.subr.bf16.mxu0 0
    %1034 = vmatpush1.bf16.msra.mxu0 0
    %1035 = vmatprep.subr.bf16.mxu0 0
    %1036 = vmatpush1.bf16.msra.mxu0 0
    %1037 = vmatprep.subr.bf16.mxu0 0
    %1038 = vmatpush1.bf16.msra.mxu0 0
    %1039 = vmatprep.subr.bf16.mxu0 0
    %1040 = vmatpush1.bf16.msra.mxu0 0
    %1041 = vmatprep.subr.bf16.mxu0 0
    %1042 = vmatpush1.bf16.msra.mxu0 0
    %1043 = vmatprep.subr.bf16.mxu0 0
    %1044 = vmatpush1.bf16.msra.mxu0 0
    %1045 = vmatprep.subr.bf16.mxu0 0
    %1046 = vmatpush1.bf16.msra.mxu0 0
    %1047 = vmatprep.subr.bf16.mxu0 0
    %1048 = vmatpush1.bf16.msra.mxu0 0
    %1049 = vmatprep.subr.bf16.mxu0 0
    %1050 = vmatpush1.bf16.msra.mxu0 0
    %1051 = vmatprep.subr.bf16.mxu0 0
    %1052 = vmatpush1.bf16.msra.mxu0 0
    %1053 = vmatprep.subr.bf16.mxu0 0
    %1054 = vmatpush1.bf16.msra.mxu0 0
    %1055 = vmatprep.subr.bf16.mxu0 0
    %1056 = vmatpush1.bf16.msra.mxu0 0
    %1057 = vmatprep.subr.bf16.mxu0 0
    %1058 = vmatpush1.bf16.msra.mxu0 0
    %1059 = vmatprep.mubr.bf16.mxu0 0
    %1060 = vmatmul.mubr.bf16.gmra.mrb[0].mxu0 %v1025
    %v1061 = vpop.f32.mrb[0].mxu0
    %v1062 = vadd.f32 0.0, %v1061
    %v1063 = vpop.f32.mrb[0].mxu0
    %v1064 = vpop.f32.mrb[0].mxu0
    %v1065 = vpop.f32.mrb[0].mxu0
    %1066 = vdwg.mxu0
    %v1067 = vpack.c.bf16 %v1003, %v1002
    %v1068 = vpack.c.bf16 %v1062, %v1062
    %v1070 = vsel %vm80, %v1067, 0
    %vm1072 = vcmask 1043456
    %v1074 = vsel %vm1072, %v1068, 0
    %1076 = vmatprep.subr.bf16.mxu0 0
    %1077 = vmatpush1.bf16.msra.mxu0 %v1074
    %1078 = vmatprep.subr.bf16.mxu0 0
    %1079 = vmatpush1.bf16.msra.mxu0 0
    %1080 = vmatprep.subr.bf16.mxu0 0
    %1081 = vmatpush1.bf16.msra.mxu0 0
    %1082 = vmatprep.subr.bf16.mxu0 0
    %1083 = vmatpush1.bf16.msra.mxu0 0
    %1084 = vmatprep.subr.bf16.mxu0 0
    %1085 = vmatpush1.bf16.msra.mxu0 0
    %1086 = vmatprep.subr.bf16.mxu0 0
    %1087 = vmatpush1.bf16.msra.mxu0 0
    %1088 = vmatprep.subr.bf16.mxu0 0
    %1089 = vmatpush1.bf16.msra.mxu0 0
    %1090 = vmatprep.subr.bf16.mxu0 0
    %1091 = vmatpush1.bf16.msra.mxu0 0
    %1092 = vmatprep.subr.bf16.mxu0 0
    %1093 = vmatpush1.bf16.msra.mxu0 0
    %1094 = vmatprep.subr.bf16.mxu0 0
    %1095 = vmatpush1.bf16.msra.mxu0 0
    %1096 = vmatprep.subr.bf16.mxu0 0
    %1097 = vmatpush1.bf16.msra.mxu0 0
    %1098 = vmatprep.subr.bf16.mxu0 0
    %1099 = vmatpush1.bf16.msra.mxu0 0
    %1100 = vmatprep.subr.bf16.mxu0 0
    %1101 = vmatpush1.bf16.msra.mxu0 0
    %1102 = vmatprep.subr.bf16.mxu0 0
    %1103 = vmatpush1.bf16.msra.mxu0 0
    %1104 = vmatprep.subr.bf16.mxu0 0
    %1105 = vmatpush1.bf16.msra.mxu0 0
    %1106 = vmatprep.subr.bf16.mxu0 0
    %1107 = vmatpush1.bf16.msra.mxu0 0
    %1108 = vmatprep.mubr.bf16.mxu0 0
    %1109 = vmatmul.mubr.bf16.gmra.mrb[0].mxu0 %v1070
    %v1110 = vpop.f32.mrb[0].mxu0
    %v1111 = vadd.f32 0.0, %v1110
    %v1112 = vpop.f32.mrb[0].mxu0
    %v1113 = vpop.f32.mrb[0].mxu0
    %v1114 = vadd.f32 0.0, %v1113
    %v1115 = vpop.f32.mrb[0].mxu0
    %1116 = vdwg.mxu0
    %v1118 = vsel %vm80, %v952, 0
    %v1121 = vsel %vm1072, %v953, 0
    %1123 = vmatprep.subr.bf16.mxu0 0
    %1124 = vmatpush1.bf16.msra.mxu0 %v1121
    %1125 = vmatprep.subr.bf16.mxu0 0
    %1126 = vmatpush1.bf16.msra.mxu0 0
    %1127 = vmatprep.subr.bf16.mxu0 0
    %1128 = vmatpush1.bf16.msra.mxu0 0
    %1129 = vmatprep.subr.bf16.mxu0 0
    %1130 = vmatpush1.bf16.msra.mxu0 0
    %1131 = vmatprep.subr.bf16.mxu0 0
    %1132 = vmatpush1.bf16.msra.mxu0 0
    %1133 = vmatprep.subr.bf16.mxu0 0
    %1134 = vmatpush1.bf16.msra.mxu0 0
    %1135 = vmatprep.subr.bf16.mxu0 0
    %1136 = vmatpush1.bf16.msra.mxu0 0
    %1137 = vmatprep.subr.bf16.mxu0 0
    %1138 = vmatpush1.bf16.msra.mxu0 0
    %1139 = vmatprep.subr.bf16.mxu0 0
    %1140 = vmatpush1.bf16.msra.mxu0 0
    %1141 = vmatprep.subr.bf16.mxu0 0
    %1142 = vmatpush1.bf16.msra.mxu0 0
    %1143 = vmatprep.subr.bf16.mxu0 0
    %1144 = vmatpush1.bf16.msra.mxu0 0
    %1145 = vmatprep.subr.bf16.mxu0 0
    %1146 = vmatpush1.bf16.msra.mxu0 0
    %1147 = vmatprep.subr.bf16.mxu0 0
    %1148 = vmatpush1.bf16.msra.mxu0 0
    %1149 = vmatprep.subr.bf16.mxu0 0
    %1150 = vmatpush1.bf16.msra.mxu0 0
    %1151 = vmatprep.subr.bf16.mxu0 0
    %1152 = vmatpush1.bf16.msra.mxu0 0
    %1153 = vmatprep.subr.bf16.mxu0 0
    %1154 = vmatpush1.bf16.msra.mxu0 0
    %1155 = vmatprep.mubr.bf16.mxu0 0
    %1156 = vmatmul.mubr.bf16.gmra.mrb[0].mxu0 %v1118
    %v1157 = vpop.f32.mrb[0].mxu0
    %v1158 = vadd.f32 %v1111, %v1157
    %v1159 = vpop.f32.mrb[0].mxu0
    %v1160 = vpop.f32.mrb[0].mxu0
    %v1161 = vadd.f32 %v1114, %v1160
    %v1162 = vpop.f32.mrb[0].mxu0
    %1163 = vdwg.mxu0
    %1164 = vset.pattern.permute.xlu0 2
    %1165 = vperm.xlu0 %1164, %v787
    %v1166 = vpop.permute.xlu0 %1165
    %1168 = vset.pattern.permute.xlu0 2
    %1169 = vperm.xlu0 %1168, %v790
    %v1170 = vpop.permute.xlu0 %1169
    %v1172 = vlaneseq
    %v1173 = vshrl.u32 %v1172, 7
    %v1174 = vsub.s32 2, %v1173
    %v1175 = vrot.slane %v830, %v1174
    %v1176 = vadd.f32 %v1166, %v1175
    %v1177 = vadd.f32 %v1170, %v1175
    %vm1178 = vcmp.gt.f32.partialorder %v1176, 0.0
    %vm1179 = vcmp.gt.f32.partialorder %v1177, 0.0
    %v1180 = vmul.f32 %v1176, 0.2
    %v1181 = vmul.f32 %v1177, 0.2
    %v1182 = vsel %vm1178, %v1176, %v1180
    %v1183 = vsel %vm1179, %v1177, %v1181
    %v1184 = vsel %vm835, %v1182, -1e+30
    %v1185 = vsel %vm836, %v1183, -1e+30
    %v1186 = vsel %vm80, %v1184, -inf
    %v1187 = vsel %vm80, %v1185, -inf
    %v1188 = vmax.f32 %v1186, %v1187
    %v1189 = vrot.slane %v1188, 4
    %v1190 = vmax.f32 %v1188, %v1189
    %v1191 = vrot.slane %v1190, 2
    %v1192 = vmax.f32 %v1190, %v1191
    %v1193 = vrot.slane %v1192, 1
    %v1194 = vmax.f32 %v1192, %v1193
    %v1195 = vsub.f32 %v1184, %v1194
    %v1196 = vsub.f32 %v1185, %v1194
    %v1197 = vmul.f32 %v1195, 1.442695
    %v1198 = vpow.pop %v1197
    %v1199 = vmul.f32 %v1196, 1.442695
    %v1200 = vpow.pop %v1199
    %v1201 = vsel %vm80, %v1198, 0.0
    %v1202 = vsel %vm80, %v1200, 0.0
    %v1203 = vadd.f32 %v1201, %v1202
    %v1204 = vrot.slane %v1203, 4
    %v1205 = vadd.f32 %v1203, %v1204
    %v1206 = vrot.slane %v1205, 2
    %v1207 = vadd.f32 %v1205, %v1206
    %v1208 = vrot.slane %v1207, 1
    %v1209 = vadd.f32 %v1207, %v1208
    %v1210 = vadd.f32 %v1209, 1e-16
    %v1211 = vrcp.pop %v1210
    %v1212 = vmul.f32 %v1198, %v1211
    %v1213 = vmul.f32 %v1200, %v1211
    %v1214 = vmul.f32 %v1212, %v92
    %v1215 = vmul.f32 %v1213, %v92
    %v1216 = vpack.c.bf16 %v1215, %v1214
    %v1217 = vpack.c.bf16 %v684, %v680
    %1218 = vxpose.xlu0.c.b16.start [1/8] %v1216, 128
    %1219 = vxpose.xlu0.c.b16.cont [2/8] 0, 128
    %1220 = vxpose.xlu0.c.b16.cont [3/8] 0, 128
    %1221 = vxpose.xlu0.c.b16.cont [4/8] 0, 128
    %1222 = vxpose.xlu0.c.b16.cont [5/8] 0, 128
    %1223 = vxpose.xlu0.c.b16.cont [6/8] 0, 128
    %1224 = vxpose.xlu0.c.b16.cont [7/8] 0, 128
    %1225 = vxpose.xlu0.c.b16.end [8/8] 0, 128
    %v1226 = vpop.trf.xlu0
    %v1227 = vpop.trf.xlu0
    %v1228 = vpop.trf.xlu0
    %v1229 = vpop.trf.xlu0
    %v1230 = vpop.trf.xlu0
    %v1231 = vpop.trf.xlu0
    %v1232 = vpop.trf.xlu0
    %v1233 = vpop.trf.xlu0
    %v1235 = vsel %vm356, %v1226, 0
    %1237 = vmatprep.subr.bf16.mxu0 0
    %1238 = vmatpush1.bf16.msra.mxu0 %v1217
    %1239 = vmatprep.subr.bf16.mxu0 0
    %1240 = vmatpush1.bf16.msra.mxu0 0
    %1241 = vmatprep.subr.bf16.mxu0 0
    %1242 = vmatpush1.bf16.msra.mxu0 0
    %1243 = vmatprep.subr.bf16.mxu0 0
    %1244 = vmatpush1.bf16.msra.mxu0 0
    %1245 = vmatprep.subr.bf16.mxu0 0
    %1246 = vmatpush1.bf16.msra.mxu0 0
    %1247 = vmatprep.subr.bf16.mxu0 0
    %1248 = vmatpush1.bf16.msra.mxu0 0
    %1249 = vmatprep.subr.bf16.mxu0 0
    %1250 = vmatpush1.bf16.msra.mxu0 0
    %1251 = vmatprep.subr.bf16.mxu0 0
    %1252 = vmatpush1.bf16.msra.mxu0 0
    %1253 = vmatprep.subr.bf16.mxu0 0
    %1254 = vmatpush1.bf16.msra.mxu0 0
    %1255 = vmatprep.subr.bf16.mxu0 0
    %1256 = vmatpush1.bf16.msra.mxu0 0
    %1257 = vmatprep.subr.bf16.mxu0 0
    %1258 = vmatpush1.bf16.msra.mxu0 0
    %1259 = vmatprep.subr.bf16.mxu0 0
    %1260 = vmatpush1.bf16.msra.mxu0 0
    %1261 = vmatprep.subr.bf16.mxu0 0
    %1262 = vmatpush1.bf16.msra.mxu0 0
    %1263 = vmatprep.subr.bf16.mxu0 0
    %1264 = vmatpush1.bf16.msra.mxu0 0
    %1265 = vmatprep.subr.bf16.mxu0 0
    %1266 = vmatpush1.bf16.msra.mxu0 0
    %1267 = vmatprep.subr.bf16.mxu0 0
    %1268 = vmatpush1.bf16.msra.mxu0 0
    %1269 = vmatprep.mubr.bf16.mxu0 0
    %1270 = vmatmul.mubr.bf16.gmra.mrb[0].mxu0 %v1235
    %v1271 = vpop.f32.mrb[0].mxu0
    %v1272 = vadd.f32 0.0, %v1271
    %v1273 = vpop.f32.mrb[0].mxu0
    %v1274 = vpop.f32.mrb[0].mxu0
    %v1275 = vpop.f32.mrb[0].mxu0
    %1276 = vdwg.mxu0
    %v1277 = vpack.c.bf16 %v1213, %v1212
    %v1278 = vpack.c.bf16 %v1272, %v1272
    %v1280 = vsel %vm80, %v1277, 0
    %v1283 = vsel %vm1072, %v1278, 0
    %1285 = vmatprep.subr.bf16.mxu0 0
    %1286 = vmatpush1.bf16.msra.mxu0 %v1283
    %1287 = vmatprep.subr.bf16.mxu0 0
    %1288 = vmatpush1.bf16.msra.mxu0 0
    %1289 = vmatprep.subr.bf16.mxu0 0
    %1290 = vmatpush1.bf16.msra.mxu0 0
    %1291 = vmatprep.subr.bf16.mxu0 0
    %1292 = vmatpush1.bf16.msra.mxu0 0
    %1293 = vmatprep.subr.bf16.mxu0 0
    %1294 = vmatpush1.bf16.msra.mxu0 0
    %1295 = vmatprep.subr.bf16.mxu0 0
    %1296 = vmatpush1.bf16.msra.mxu0 0
    %1297 = vmatprep.subr.bf16.mxu0 0
    %1298 = vmatpush1.bf16.msra.mxu0 0
    %1299 = vmatprep.subr.bf16.mxu0 0
    %1300 = vmatpush1.bf16.msra.mxu0 0
    %1301 = vmatprep.subr.bf16.mxu0 0
    %1302 = vmatpush1.bf16.msra.mxu0 0
    %1303 = vmatprep.subr.bf16.mxu0 0
    %1304 = vmatpush1.bf16.msra.mxu0 0
    %1305 = vmatprep.subr.bf16.mxu0 0
    %1306 = vmatpush1.bf16.msra.mxu0 0
    %1307 = vmatprep.subr.bf16.mxu0 0
    %1308 = vmatpush1.bf16.msra.mxu0 0
    %1309 = vmatprep.subr.bf16.mxu0 0
    %1310 = vmatpush1.bf16.msra.mxu0 0
    %1311 = vmatprep.subr.bf16.mxu0 0
    %1312 = vmatpush1.bf16.msra.mxu0 0
    %1313 = vmatprep.subr.bf16.mxu0 0
    %1314 = vmatpush1.bf16.msra.mxu0 0
    %1315 = vmatprep.subr.bf16.mxu0 0
    %1316 = vmatpush1.bf16.msra.mxu0 0
    %1317 = vmatprep.mubr.bf16.mxu0 0
    %1318 = vmatmul.mubr.bf16.gmra.mrb[0].mxu0 %v1280
    %v1319 = vpop.f32.mrb[0].mxu0
    %v1320 = vadd.f32 0.0, %v1319
    %v1321 = vpop.f32.mrb[0].mxu0
    %v1322 = vpop.f32.mrb[0].mxu0
    %v1323 = vadd.f32 0.0, %v1322
    %v1324 = vpop.f32.mrb[0].mxu0
    %1325 = vdwg.mxu0
    %v1326 = vadd.f32 %v1158, %v1320
    %v1327 = vadd.f32 %v1161, %v1323
    %1328 = vset.pattern.permute.xlu0 3
    %1329 = vperm.xlu0 %1328, %v787
    %v1330 = vpop.permute.xlu0 %1329
    %1332 = vset.pattern.permute.xlu0 3
    %1333 = vperm.xlu0 %1332, %v790
    %v1334 = vpop.permute.xlu0 %1333
    %v1336 = vlaneseq
    %v1337 = vshrl.u32 %v1336, 7
    %v1338 = vsub.s32 3, %v1337
    %v1339 = vrot.slane %v830, %v1338
    %v1340 = vadd.f32 %v1330, %v1339
    %v1341 = vadd.f32 %v1334, %v1339
    %vm1342 = vcmp.gt.f32.partialorder %v1340, 0.0
    %vm1343 = vcmp.gt.f32.partialorder %v1341, 0.0
    %v1344 = vmul.f32 %v1340, 0.2
    %v1345 = vmul.f32 %v1341, 0.2
    %v1346 = vsel %vm1342, %v1340, %v1344
    %v1347 = vsel %vm1343, %v1341, %v1345
    %v1348 = vsel %vm835, %v1346, -1e+30
    %v1349 = vsel %vm836, %v1347, -1e+30
    %v1350 = vsel %vm80, %v1348, -inf
    %v1351 = vsel %vm80, %v1349, -inf
    %v1352 = vmax.f32 %v1350, %v1351
    %v1353 = vrot.slane %v1352, 4
    %v1354 = vmax.f32 %v1352, %v1353
    %v1355 = vrot.slane %v1354, 2
    %v1356 = vmax.f32 %v1354, %v1355
    %v1357 = vrot.slane %v1356, 1
    %v1358 = vmax.f32 %v1356, %v1357
    %v1359 = vsub.f32 %v1348, %v1358
    %v1360 = vsub.f32 %v1349, %v1358
    %v1361 = vmul.f32 %v1359, 1.442695
    %v1362 = vpow.pop %v1361
    %v1363 = vmul.f32 %v1360, 1.442695
    %v1364 = vpow.pop %v1363
    %v1365 = vsel %vm80, %v1362, 0.0
    %v1366 = vsel %vm80, %v1364, 0.0
    %v1367 = vadd.f32 %v1365, %v1366
    %v1368 = vrot.slane %v1367, 4
    %v1369 = vadd.f32 %v1367, %v1368
    %v1370 = vrot.slane %v1369, 2
    %v1371 = vadd.f32 %v1369, %v1370
    %v1372 = vrot.slane %v1371, 1
    %v1373 = vadd.f32 %v1371, %v1372
    %v1374 = vadd.f32 %v1373, 1e-16
    %v1375 = vrcp.pop %v1374
    %v1376 = vmul.f32 %v1362, %v1375
    %v1377 = vmul.f32 %v1364, %v1375
    %v1378 = vmul.f32 %v1376, %v92
    %v1379 = vmul.f32 %v1377, %v92
    %v1380 = vpack.c.bf16 %v1379, %v1378
    %v1381 = vpack.c.bf16 %v686, %v682
    %1382 = vxpose.xlu0.c.b16.start [1/8] %v1380, 128
    %1383 = vxpose.xlu0.c.b16.cont [2/8] 0, 128
    %1384 = vxpose.xlu0.c.b16.cont [3/8] 0, 128
    %1385 = vxpose.xlu0.c.b16.cont [4/8] 0, 128
    %1386 = vxpose.xlu0.c.b16.cont [5/8] 0, 128
    %1387 = vxpose.xlu0.c.b16.cont [6/8] 0, 128
    %1388 = vxpose.xlu0.c.b16.cont [7/8] 0, 128
    %1389 = vxpose.xlu0.c.b16.end [8/8] 0, 128
    %v1390 = vpop.trf.xlu0
    %v1391 = vpop.trf.xlu0
    %v1392 = vpop.trf.xlu0
    %v1393 = vpop.trf.xlu0
    %v1394 = vpop.trf.xlu0
    %v1395 = vpop.trf.xlu0
    %v1396 = vpop.trf.xlu0
    %v1397 = vpop.trf.xlu0
    %v1399 = vsel %vm356, %v1390, 0
    %1401 = vmatprep.subr.bf16.mxu0 0
    %1402 = vmatpush1.bf16.msra.mxu0 %v1381
    %1403 = vmatprep.subr.bf16.mxu0 0
    %1404 = vmatpush1.bf16.msra.mxu0 0
    %1405 = vmatprep.subr.bf16.mxu0 0
    %1406 = vmatpush1.bf16.msra.mxu0 0
    %1407 = vmatprep.subr.bf16.mxu0 0
    %1408 = vmatpush1.bf16.msra.mxu0 0
    %1409 = vmatprep.subr.bf16.mxu0 0
    %1410 = vmatpush1.bf16.msra.mxu0 0
    %1411 = vmatprep.subr.bf16.mxu0 0
    %1412 = vmatpush1.bf16.msra.mxu0 0
    %1413 = vmatprep.subr.bf16.mxu0 0
    %1414 = vmatpush1.bf16.msra.mxu0 0
    %1415 = vmatprep.subr.bf16.mxu0 0
    %1416 = vmatpush1.bf16.msra.mxu0 0
    %1417 = vmatprep.subr.bf16.mxu0 0
    %1418 = vmatpush1.bf16.msra.mxu0 0
    %1419 = vmatprep.subr.bf16.mxu0 0
    %1420 = vmatpush1.bf16.msra.mxu0 0
    %1421 = vmatprep.subr.bf16.mxu0 0
    %1422 = vmatpush1.bf16.msra.mxu0 0
    %1423 = vmatprep.subr.bf16.mxu0 0
    %1424 = vmatpush1.bf16.msra.mxu0 0
    %1425 = vmatprep.subr.bf16.mxu0 0
    %1426 = vmatpush1.bf16.msra.mxu0 0
    %1427 = vmatprep.subr.bf16.mxu0 0
    %1428 = vmatpush1.bf16.msra.mxu0 0
    %1429 = vmatprep.subr.bf16.mxu0 0
    %1430 = vmatpush1.bf16.msra.mxu0 0
    %1431 = vmatprep.subr.bf16.mxu0 0
    %1432 = vmatpush1.bf16.msra.mxu0 0
    %1433 = vmatprep.mubr.bf16.mxu0 0
    %1434 = vmatmul.mubr.bf16.gmra.mrb[0].mxu0 %v1399
    %v1435 = vpop.f32.mrb[0].mxu0
    %v1436 = vadd.f32 0.0, %v1435
    %v1437 = vpop.f32.mrb[0].mxu0
    %v1438 = vpop.f32.mrb[0].mxu0
    %v1439 = vpop.f32.mrb[0].mxu0
    %1440 = vdwg.mxu0
    %v1441 = vpack.c.bf16 %v1377, %v1376
    %v1442 = vpack.c.bf16 %v1436, %v1436
    %v1444 = vsel %vm80, %v1441, 0
    %v1447 = vsel %vm1072, %v1442, 0
    %1449 = vmatprep.subr.bf16.mxu0 0
    %1450 = vmatpush1.bf16.msra.mxu0 %v1447
    %1451 = vmatprep.subr.bf16.mxu0 0
    %1452 = vmatpush1.bf16.msra.mxu0 0
    %1453 = vmatprep.subr.bf16.mxu0 0
    %1454 = vmatpush1.bf16.msra.mxu0 0
    %1455 = vmatprep.subr.bf16.mxu0 0
    %1456 = vmatpush1.bf16.msra.mxu0 0
    %1457 = vmatprep.subr.bf16.mxu0 0
    %1458 = vmatpush1.bf16.msra.mxu0 0
    %1459 = vmatprep.subr.bf16.mxu0 0
    %1460 = vmatpush1.bf16.msra.mxu0 0
    %1461 = vmatprep.subr.bf16.mxu0 0
    %1462 = vmatpush1.bf16.msra.mxu0 0
    %1463 = vmatprep.subr.bf16.mxu0 0
    %1464 = vmatpush1.bf16.msra.mxu0 0
    %1465 = vmatprep.subr.bf16.mxu0 0
    %1466 = vmatpush1.bf16.msra.mxu0 0
    %1467 = vmatprep.subr.bf16.mxu0 0
    %1468 = vmatpush1.bf16.msra.mxu0 0
    %1469 = vmatprep.subr.bf16.mxu0 0
    %1470 = vmatpush1.bf16.msra.mxu0 0
    %1471 = vmatprep.subr.bf16.mxu0 0
    %1472 = vmatpush1.bf16.msra.mxu0 0
    %1473 = vmatprep.subr.bf16.mxu0 0
    %1474 = vmatpush1.bf16.msra.mxu0 0
    %1475 = vmatprep.subr.bf16.mxu0 0
    %1476 = vmatpush1.bf16.msra.mxu0 0
    %1477 = vmatprep.subr.bf16.mxu0 0
    %1478 = vmatpush1.bf16.msra.mxu0 0
    %1479 = vmatprep.subr.bf16.mxu0 0
    %1480 = vmatpush1.bf16.msra.mxu0 0
    %1481 = vmatprep.mubr.bf16.mxu0 0
    %1482 = vmatmul.mubr.bf16.gmra.mrb[0].mxu0 %v1444
    %v1483 = vpop.f32.mrb[0].mxu0
    %v1484 = vadd.f32 0.0, %v1483
    %v1485 = vpop.f32.mrb[0].mxu0
    %v1486 = vpop.f32.mrb[0].mxu0
    %v1487 = vadd.f32 0.0, %v1486
    %v1488 = vpop.f32.mrb[0].mxu0
    %1489 = vdwg.mxu0
    %v1490 = vadd.f32 %v1326, %v1484
    %v1491 = vadd.f32 %v1327, %v1487
    %v1492 = vmul.f32 %v111, 0.25
    %v1493 = vmul.f32 %v112, 0.25
    %v1494 = vmul.f32 %v1490, %v1492
    %v1495 = vmul.f32 %v1491, %v1493
    %v1496 = vld [vmem:[%s11] sm:$0x1]
    %v1498 = vlaneseq
    %v1499 = vshrl.u32 %v1498, 7
    %v1500 = vsub.s32 0, %v1499
    %v1501 = vrot.slane %v1496, %v1500
    %v1503 = vadd.f32 %v1494, %v1501
    %v1504 = vadd.f32 %v1495, %v1501
    %1505 = vst [vmem:[#allocation7] sm:$0xff] %v1503
    %1506 = vst [vmem:[#allocation7 + $0x8] sm:$0xff] %v1504
    // Predicated region
    $region58: #{tpu_custom_call.1} parent=1 // pred_check
      _
    $region59: #{tpu_custom_call.1} parent=1 // pred_check_branch
      %1508 = sbr.rel (0) target = $region61
    $region60: #{tpu_custom_call.1} parent=1 // pred_region
      %s1510 = ssub.s32 256, 256
      %1511 = vsyncadd [#allocation4], %s1510
      %s1512 = sshll.u32 [#allocation7], 4
      %s1513 = int_to_ptr.vmem [resolvable:$true] %s1512
      %1518 = dma.vmem_to_hbm [thread:$0]  %s1513, 256, %s12, [#allocation4], 128, 128, 8
    $region61: #{tpu_custom_call.1} parent=1 // pred_fallthru
      _
    // Predicated region
    $region62: #{tpu_custom_call.1} parent=1 // pred_check
      _
    $region63: #{tpu_custom_call.1} parent=1 // pred_check_branch
      %1520 = sbr.rel (0) target = $region65
    $region64: #{tpu_custom_call.1} parent=1 // pred_region
      %s1522 = ssub.s32 128, 128
      %1523 = vsyncadd [#allocation9], %s1522
      %s1525 = sshll.u32 [#allocation8], 4
      %s1526 = int_to_ptr.vmem [resolvable:$true] %s1525
      %1528 = dma.vmem_to_hbm [thread:$0]  %s1526, 128, %s13, [#allocation9]
    $region65: #{tpu_custom_call.1} parent=1 // pred_fallthru
      _
    // Predicated region
    $region66: #{tpu_custom_call.1} parent=1 // pred_check
      _
    $region67: #{tpu_custom_call.1} parent=1 // pred_check_branch
      %1530 = sbr.rel (0) target = $region69
    $region68: #{tpu_custom_call.1} parent=1 // pred_region
      %1531 = dma.done [#allocation4], 256
    $region69: #{tpu_custom_call.1} parent=1 // pred_fallthru
      _
    // Predicated region
    $region70: #{tpu_custom_call.1} parent=1 // pred_check
      _
    $region71: #{tpu_custom_call.1} parent=1 // pred_check_branch
      %1533 = sbr.rel (0) target = $region73
    $region72: #{tpu_custom_call.1} parent=1 // pred_region
      %1534 = dma.done [#allocation9], 128
    $region73: #{tpu_custom_call.1} parent=1 // pred_fallthru
      _
    %1535 = vsyncpa [#allocation3], 1
    %1536 = vsyncpa [#allocation6], 1
    %1537 = vsyncpa [#allocation4], 1
    %1538 = vsyncpa [#allocation9], 1

</llo_original>
